<compile_context>
chip_gen: v7x
topology: tpu7x:2x2x1
jax: 0.10.0
libtpu: 0.0.40
codegen_flags: <defaults>
</compile_context>

<pallas_src>
import functools

import jax
import jax.numpy as jnp
from jax.experimental import pallas as pl
from jax.experimental.pallas import tpu as pltpu

IN_FEATURES = 1 * 32 * 64      # 2048
OUT_CLASSES = 100
PADDED_CLASSES = 128           # lane-dense classifier width
NEG_FILL = -1e30               # "minus infinity" bias for the padded classes


def _activation(x, act):
    if act == "relu":
        return jnp.maximum(x, 0.0)
    elif act == "sigmoid":
        return jax.nn.sigmoid(x)
    elif act == "tanh":
        return jnp.tanh(x)
    # PyTorch module silently applies no activation for unknown strings.
    return x


def mlp_kernel(x_ref, w1_ref, b1_ref, w2_ref, b2_ref, w3_ref, b3_ref, o_ref,
               *, act):
    # f32 x tile -> bf16 on the VPU right before the fc1 MXU dot (free, hidden
    # under the matmul / x DMA; avoids a wrapper-side HBM cast pass).  MXU
    # matmuls use bf16 operands with f32 accumulation; bias add, activation
    # and log_softmax stay in f32 (v5e has no bf16 VPU/EUP).
    x = x_ref[...].astype(jnp.bfloat16)                               # (bb, 2048)

    h = jnp.dot(x, w1_ref[...], preferred_element_type=jnp.float32) + b1_ref[...]
    h = _activation(h, act)

    h = jnp.dot(h.astype(jnp.bfloat16), w2_ref[...],
                preferred_element_type=jnp.float32) + b2_ref[...]
    h = _activation(h, act)

    logits = jnp.dot(h.astype(jnp.bfloat16), w3_ref[...],
                     preferred_element_type=jnp.float32) + b3_ref[...]

    # log_softmax over the padded 128 lanes.  Padded classes carry a -1e30
    # bias (and zero weights), so exp(shifted) == 0 there and the result over
    # the real 100 classes is identical to an unpadded log_softmax.
    m = jnp.max(logits, axis=-1, keepdims=True)
    shifted = logits - m
    lse = jnp.log(jnp.sum(jnp.exp(shifted), axis=-1, keepdims=True))
    o_ref[...] = (shifted - lse).astype(o_ref.dtype)


def _round_up(x, m):
    return ((x + m - 1) // m) * m


def _num_tensorcores_per_chip():
    """Best-effort TensorCores-per-chip detection (v7x = 2; v5e/v6e = 1)."""
    try:
        kind = jax.devices()[0].device_kind.lower()
    except Exception:
        return 1
    return 2 if "v7" in kind else 1


def _choose_batch_tile(B, block_b, num_tc, hidden_p, vmem_budget):
    """Pick (bb, B_pad): large sublane-aligned tiles, generation aware."""
    B8 = _round_up(max(B, 1), 8)
    block_b = max(8, _round_up(block_b, 8))

    # Step count with the largest allowed tile (no forced split on 1-TC chips).
    steps = max(1, pl.cdiv(B8, block_b))
    if num_tc >= 2 and steps % 2 == 1:
        # Dual-TC (v7x): prefer an EVEN step count so both cores get equal
        # work — but never shrink the tile below 128 rows to achieve it.
        cand_steps = steps + 1
        cand_bb = _round_up(pl.cdiv(B8, cand_steps), 8)
        if cand_bb >= min(128, B8):
            steps = cand_steps

    bb = min(block_b, _round_up(pl.cdiv(B8, steps), 8))

    # VMEM cap: 2 x (f32 x tile + f32 out tile) + 2 x bf16 weights + slack
    # must fit the scoped budget (conservative; actual use is lower).
    def _vmem_need(b):
        w_bytes = 2 * (IN_FEATURES * hidden_p + hidden_p * hidden_p
                       + hidden_p * PADDED_CLASSES)
        return (2 * b * (IN_FEATURES + PADDED_CLASSES) * 4
                + 2 * w_bytes + (2 << 20))

    while bb > 8 and _vmem_need(bb) > vmem_budget:
        bb = max(8, _round_up(bb // 2, 8))

    B_pad = _round_up(max(B, 1), bb)
    return bb, B_pad


def three_layer_net_forward(x, params, *, act="relu", block_b=512,
                            out_dtype=jnp.float32, num_tensorcores=None):
    """x: (B, 1, 32, 64) float32 (NCHW); returns (B, 100) log-probs."""
    B = x.shape[0]
    x_flat = x.reshape(B, -1)                          # view(x.size(0), -1)
    assert x_flat.shape[1] == IN_FEATURES

    w1, b1, w2, b2, w3, b3 = params
    hidden = w1.shape[1]
    hidden_p = _round_up(hidden, 128)                  # lane-dense hidden width

    num_tc = (_num_tensorcores_per_chip()
              if num_tensorcores is None else num_tensorcores)

    # Scoped-VMEM budget: lifts v5e's 16 MiB default, matches v7x's 32 MiB
    # scoped default, well under its 64 MiB physical VMEM.
    vmem_limit = 32 * 1024 * 1024
    bb, B_pad = _choose_batch_tile(B, block_b, num_tc, hidden_p,
                                   vmem_budget=vmem_limit - (4 << 20))
    grid = (B_pad // bb,)

    # Pad the batch to a tile multiple only when needed (zero rows, sliced off
    # below); skipping the pad avoids an extra HBM pass over x.
    if B_pad != B:
        x_flat = jnp.pad(x_flat, ((0, B_pad - B), (0, 0)))

    # Lane-dense hidden: zero-pad W1 cols / b1 / W2 rows+cols / b2 / W3 rows.
    # Padded hidden activations only ever multiply zero W2/W3 rows, so the
    # real result is unchanged for relu/sigmoid/tanh.
    hp = hidden_p - hidden
    if hp:
        w1 = jnp.pad(w1, ((0, 0), (0, hp)))
        b1 = jnp.pad(b1, ((0, 0), (0, hp)))
        w2 = jnp.pad(w2, ((0, hp), (0, hp)))
        b2 = jnp.pad(b2, ((0, 0), (0, hp)))
        w3 = jnp.pad(w3, ((0, hp), (0, 0)))

    # bf16 weights for the MXU (tiny + reused every step -> cast in wrapper).
    w1_bf = w1.astype(jnp.bfloat16)
    w2_bf = w2.astype(jnp.bfloat16)
    # Classifier padded to 128 lanes: zero weight columns, -1e30 bias (f32).
    w3_bf = jnp.pad(w3, ((0, 0), (0, PADDED_CLASSES - OUT_CLASSES))
                    ).astype(jnp.bfloat16)
    b3_pad = jnp.pad(b3, ((0, 0), (0, PADDED_CLASSES - OUT_CLASSES)),
                     constant_values=NEG_FILL)          # stays float32

    kernel = functools.partial(mlp_kernel, act=act)

    flops = 2 * B_pad * (IN_FEATURES * hidden_p + hidden_p * hidden_p
                         + hidden_p * PADDED_CLASSES)
    transcendentals = B_pad * (PADDED_CLASSES + 1)       # softmax exp + log
    if act in ("sigmoid", "tanh"):
        transcendentals += 2 * B_pad * hidden_p          # per-layer EUP ops
    out_itemsize = jnp.dtype(out_dtype).itemsize
    bytes_accessed = (
        x_flat.size * 4
        + (w1_bf.size + w2_bf.size + w3_bf.size) * 2
        + (b1.size + b2.size + b3_pad.size) * 4
        + B_pad * PADDED_CLASSES * out_itemsize)
    cost = pl.CostEstimate(flops=flops, transcendentals=transcendentals,
                           bytes_accessed=bytes_accessed)

    out = pl.pallas_call(
        kernel,
        out_shape=jax.ShapeDtypeStruct((B_pad, PADDED_CLASSES), out_dtype),
        grid_spec=pltpu.PrefetchScalarGridSpec(
            num_scalar_prefetch=0,
            grid=grid,
            in_specs=[
                pl.BlockSpec((bb, IN_FEATURES), lambda i: (i, 0)),           # x tile (f32)
                pl.BlockSpec((IN_FEATURES, hidden_p), lambda i: (0, 0)),     # W1 (bf16)
                pl.BlockSpec((1, hidden_p), lambda i: (0, 0)),               # b1 (f32)
                pl.BlockSpec((hidden_p, hidden_p), lambda i: (0, 0)),        # W2 (bf16)
                pl.BlockSpec((1, hidden_p), lambda i: (0, 0)),               # b2 (f32)
                pl.BlockSpec((hidden_p, PADDED_CLASSES), lambda i: (0, 0)),  # W3 (bf16, padded)
                pl.BlockSpec((1, PADDED_CLASSES), lambda i: (0, 0)),         # b3 (f32, padded)
            ],
            out_specs=pl.BlockSpec((bb, PADDED_CLASSES), lambda i: (i, 0)),
        ),
        compiler_params=pltpu.CompilerParams(
            dimension_semantics=("parallel",),
            vmem_limit_bytes=vmem_limit,
        ),
        cost_estimate=cost,
    )(x_flat, w1_bf, b1, w2_bf, b2, w3_bf, b3_pad)

    return out[:B, :OUT_CLASSES]


def init_params(key, hidden):
    """Deterministic init mirroring nn.Linear shapes (weights stored (in, out))."""
    ks = jax.random.split(key, 6)

    def linear(kw, kb, fan_in, fan_out):
        bound = 1.0 / jnp.sqrt(fan_in)
        w = jax.random.uniform(kw, (fan_in, fan_out), jnp.float32, -bound, bound)
        b = jax.random.uniform(kb, (1, fan_out), jnp.float32, -bound, bound)
        return w, b

    w1, b1 = linear(ks[0], ks[1], IN_FEATURES, hidden)
    w2, b2 = linear(ks[2], ks[3], hidden, hidden)
    w3, b3 = linear(ks[4], ks[5], hidden, OUT_CLASSES)
    return (w1, b1, w2, b2, w3, b3)


def reference_forward(x, params, act="relu"):
    """Pure f32 JAX reference matching the PyTorch module."""
    w1, b1, w2, b2, w3, b3 = params
    h = x.reshape(x.shape[0], -1)
    h = _activation(h @ w1 + b1, act)
    h = _activation(h @ w2 + b2, act)
    logits = h @ w3 + b3
    return jax.nn.log_softmax(logits, axis=1)


if __name__ == "__main__":
    key = jax.random.PRNGKey(0)
    k_x, k_p = jax.random.split(key)

    HIDDEN = 128        # layer_size
    ACT = "relu"        # act
    B = 12              # deliberately not tile-aligned: exercises batch padding

    x = jax.random.normal(k_x, (B, 1, 32, 64), dtype=jnp.float32)   # NCHW
    params = init_params(k_p, HIDDEN)

    out = three_layer_net_forward(x, params, act=ACT)
    out = jax.block_until_ready(out)

    ref = reference_forward(x, params, act=ACT)
    assert out.shape == (B, OUT_CLASSES)
    # bf16 MXU operands -> looser tolerance than a pure-f32 comparison.
    assert jnp.allclose(out, ref, atol=2e-2, rtol=2e-2), "mismatch vs JAX reference"
    # log-probs must normalize over the 100 real classes only (padding inert).
    assert jnp.allclose(jnp.sum(jnp.exp(out), axis=-1), 1.0, atol=1e-3), "bad normalization"

    print("KERNEL_OK")
</pallas_src>

<mosaic_0001>
module attributes {stable_mosaic.version = 11 : i64} {
  func.func @mlp_kernel(%arg0: i32, %arg1: memref<16x2048xf32, #tpu.memory_space<vmem>>, %arg2: memref<2048x128xbf16, #tpu.memory_space<vmem>>, %arg3: memref<1x128xf32, #tpu.memory_space<vmem>>, %arg4: memref<128x128xbf16, #tpu.memory_space<vmem>>, %arg5: memref<1x128xf32, #tpu.memory_space<vmem>>, %arg6: memref<128x128xbf16, #tpu.memory_space<vmem>>, %arg7: memref<1x128xf32, #tpu.memory_space<vmem>>, %arg8: memref<16x128xf32, #tpu.memory_space<vmem>>) attributes {dimension_semantics = [#tpu.dimension_semantics<parallel>], iteration_bounds = array<i64: 1>, scalar_prefetch = 0 : i64, scratch_operands = 0 : i64, tpu.core_type = #tpu.core_type<tc>, window_params = [{transform_indices = @transform_0, window_bounds = array<i64: 16, 2048>}, {pipeline_mode = #tpu.pipeline_mode<synchronous>, transform_indices = @transform_1, window_bounds = array<i64: 2048, 128>}, {pipeline_mode = #tpu.pipeline_mode<synchronous>, transform_indices = @transform_2, window_bounds = array<i64: 1, 128>}, {pipeline_mode = #tpu.pipeline_mode<synchronous>, transform_indices = @transform_3, window_bounds = array<i64: 128, 128>}, {pipeline_mode = #tpu.pipeline_mode<synchronous>, transform_indices = @transform_4, window_bounds = array<i64: 1, 128>}, {pipeline_mode = #tpu.pipeline_mode<synchronous>, transform_indices = @transform_5, window_bounds = array<i64: 128, 128>}, {pipeline_mode = #tpu.pipeline_mode<synchronous>, transform_indices = @transform_6, window_bounds = array<i64: 1, 128>}, {transform_indices = @transform_7, window_bounds = array<i64: 16, 128>}]} {
    %c0 = arith.constant 0 : index
    %c0_0 = arith.constant 0 : index
    %0 = vector.load %arg1[%c0, %c0_0] : memref<16x2048xf32, #tpu.memory_space<vmem>>, vector<16x2048xf32>
    %1 = arith.truncf %0 : vector<16x2048xf32> to vector<16x2048xbf16>
    %c0_1 = arith.constant 0 : index
    %c0_2 = arith.constant 0 : index
    %2 = vector.load %arg2[%c0_1, %c0_2] : memref<2048x128xbf16, #tpu.memory_space<vmem>>, vector<2048x128xbf16>
    %cst = arith.constant dense<0.000000e+00> : vector<16x128xf32>
    %3 = tpu.matmul %1, %2, %cst {dimension_numbers = #tpu.dot_dimension_numbers<[1], [0], [0], [1], [0, 0, 1, 1], [], []>} : vector<16x2048xbf16>, vector<2048x128xbf16>, vector<16x128xf32> -> vector<16x128xf32>
    %c0_3 = arith.constant 0 : index
    %c0_4 = arith.constant 0 : index
    %4 = vector.load %arg3[%c0_3, %c0_4] : memref<1x128xf32, #tpu.memory_space<vmem>>, vector<1x128xf32>
    %5 = vector.broadcast %4 : vector<1x128xf32> to vector<16x128xf32>
    %6 = arith.addf %3, %5 : vector<16x128xf32>
    %cst_5 = arith.constant 0.000000e+00 : f32
    %7 = vector.broadcast %cst_5 : f32 to vector<16x128xf32>
    %8 = arith.maximumf %6, %7 : vector<16x128xf32>
    %9 = arith.truncf %8 : vector<16x128xf32> to vector<16x128xbf16>
    %c0_6 = arith.constant 0 : index
    %c0_7 = arith.constant 0 : index
    %10 = vector.load %arg4[%c0_6, %c0_7] : memref<128x128xbf16, #tpu.memory_space<vmem>>, vector<128x128xbf16>
    %cst_8 = arith.constant dense<0.000000e+00> : vector<16x128xf32>
    %11 = tpu.matmul %9, %10, %cst_8 {dimension_numbers = #tpu.dot_dimension_numbers<[1], [0], [0], [1], [0, 0, 1, 1], [], []>} : vector<16x128xbf16>, vector<128x128xbf16>, vector<16x128xf32> -> vector<16x128xf32>
    %c0_9 = arith.constant 0 : index
    %c0_10 = arith.constant 0 : index
    %12 = vector.load %arg5[%c0_9, %c0_10] : memref<1x128xf32, #tpu.memory_space<vmem>>, vector<1x128xf32>
    %13 = vector.broadcast %12 : vector<1x128xf32> to vector<16x128xf32>
    %14 = arith.addf %11, %13 : vector<16x128xf32>
    %cst_11 = arith.constant 0.000000e+00 : f32
    %15 = vector.broadcast %cst_11 : f32 to vector<16x128xf32>
    %16 = arith.maximumf %14, %15 : vector<16x128xf32>
    %17 = arith.truncf %16 : vector<16x128xf32> to vector<16x128xbf16>
    %c0_12 = arith.constant 0 : index
    %c0_13 = arith.constant 0 : index
    %18 = vector.load %arg6[%c0_12, %c0_13] : memref<128x128xbf16, #tpu.memory_space<vmem>>, vector<128x128xbf16>
    %cst_14 = arith.constant dense<0.000000e+00> : vector<16x128xf32>
    %19 = tpu.matmul %17, %18, %cst_14 {dimension_numbers = #tpu.dot_dimension_numbers<[1], [0], [0], [1], [0, 0, 1, 1], [], []>} : vector<16x128xbf16>, vector<128x128xbf16>, vector<16x128xf32> -> vector<16x128xf32>
    %c0_15 = arith.constant 0 : index
    %c0_16 = arith.constant 0 : index
    %20 = vector.load %arg7[%c0_15, %c0_16] : memref<1x128xf32, #tpu.memory_space<vmem>>, vector<1x128xf32>
    %21 = vector.broadcast %20 : vector<1x128xf32> to vector<16x128xf32>
    %22 = arith.addf %19, %21 : vector<16x128xf32>
    %cst_17 = arith.constant dense<0xFF800000> : vector<16xf32>
    %23 = vector.multi_reduction <maximumf>, %22, %cst_17 [1] : vector<16x128xf32> to vector<16xf32>
    %24 = vector.shape_cast %23 : vector<16xf32> to vector<16x1xf32>
    %25 = vector.broadcast %24 : vector<16x1xf32> to vector<16x128xf32>
    %26 = arith.subf %22, %25 : vector<16x128xf32>
    %27 = math.exp %26 : vector<16x128xf32>
    %cst_18 = arith.constant dense<0.000000e+00> : vector<16xf32>
    %28 = vector.multi_reduction <add>, %27, %cst_18 [1] : vector<16x128xf32> to vector<16xf32>
    %29 = vector.shape_cast %28 : vector<16xf32> to vector<16x1xf32>
    %30 = math.log %29 : vector<16x1xf32>
    %31 = vector.broadcast %30 : vector<16x1xf32> to vector<16x128xf32>
    %32 = arith.subf %26, %31 : vector<16x128xf32>
    %c0_19 = arith.constant 0 : index
    %c0_20 = arith.constant 0 : index
    %33 = vector.load %arg8[%c0_19, %c0_20] : memref<16x128xf32, #tpu.memory_space<vmem>>, vector<16x128xf32>
    tpu.vector_store %arg8[%c0_19, %c0_20], %32 {strides = array<i32>} : memref<16x128xf32, #tpu.memory_space<vmem>>, vector<16x128xf32>,
    return
  }
  func.func @transform_0(%arg0: i32) -> (i32, i32) {
    %c0_i32 = arith.constant 0 : i32
    %c0_i32_0 = arith.constant 0 : i32
    return %arg0, %c0_i32 : i32, i32
  }
  func.func @transform_1(%arg0: i32) -> (i32, i32) {
    %c0_i32 = arith.constant 0 : i32
    %c0_i32_0 = arith.constant 0 : i32
    %c0_i32_1 = arith.constant 0 : i32
    return %c0_i32, %c0_i32_0 : i32, i32
  }
  func.func @transform_2(%arg0: i32) -> (i32, i32) {
    %c0_i32 = arith.constant 0 : i32
    %c0_i32_0 = arith.constant 0 : i32
    %c0_i32_1 = arith.constant 0 : i32
    return %c0_i32, %c0_i32_0 : i32, i32
  }
  func.func @transform_3(%arg0: i32) -> (i32, i32) {
    %c0_i32 = arith.constant 0 : i32
    %c0_i32_0 = arith.constant 0 : i32
    %c0_i32_1 = arith.constant 0 : i32
    return %c0_i32, %c0_i32_0 : i32, i32
  }
  func.func @transform_4(%arg0: i32) -> (i32, i32) {
    %c0_i32 = arith.constant 0 : i32
    %c0_i32_0 = arith.constant 0 : i32
    %c0_i32_1 = arith.constant 0 : i32
    return %c0_i32, %c0_i32_0 : i32, i32
  }
  func.func @transform_5(%arg0: i32) -> (i32, i32) {
    %c0_i32 = arith.constant 0 : i32
    %c0_i32_0 = arith.constant 0 : i32
    %c0_i32_1 = arith.constant 0 : i32
    return %c0_i32, %c0_i32_0 : i32, i32
  }
  func.func @transform_6(%arg0: i32) -> (i32, i32) {
    %c0_i32 = arith.constant 0 : i32
    %c0_i32_0 = arith.constant 0 : i32
    %c0_i32_1 = arith.constant 0 : i32
    return %c0_i32, %c0_i32_0 : i32, i32
  }
  func.func @transform_7(%arg0: i32) -> (i32, i32) {
    %c0_i32 = arith.constant 0 : i32
    %c0_i32_0 = arith.constant 0 : i32
    return %arg0, %c0_i32 : i32, i32
  }
}

</mosaic_0001>

<llo_original>
// kernel: tpu_custom_call.1
$region0: #{tpu_custom_call.1}
  #allocation0 [shape = 'u32[]', space=smem, size = 0x4, offset = 0x4, fixed_abs, tag = 'smem constant byte address 0x4 - core index']
  #allocation1 [shape = 'u32[144,128]{1,0:T(1,128)}', space=vmem, size = 0x12000, scoped, tag = 'internal scratch']
  %s0 = inlined_call_operand.hbm [shape: f32[16,2048], index: 0, kind: input, shape index: {}]
  %s1 = inlined_call_operand.hbm [shape: bf16[2048,128], index: 1, kind: input, shape index: {}]
  %s2 = inlined_call_operand.vmem [shape: f32[1,128], index: 2, kind: input, shape index: {}]
  %s3 = inlined_call_operand.hbm [shape: bf16[128,128], index: 3, kind: input, shape index: {}]
  %s4 = inlined_call_operand.vmem [shape: f32[1,128], index: 4, kind: input, shape index: {}]
  %s5 = inlined_call_operand.hbm [shape: bf16[128,128], index: 5, kind: input, shape index: {}]
  %s6 = inlined_call_operand.vmem [shape: f32[1,128], index: 6, kind: input, shape index: {}]
  %s7 = inlined_call_operand.hbm [shape: f32[16,128], index: 7, kind: output, shape index: {}]
  %s8 = sld [smem:[#allocation0]]
  $region54: #{tpu_custom_call.1} parent=0
    _
  %s10 = ssub.s32 1, %s8
  %s11 = scalar_select 0, %s10, %s8
  $region1: #{tpu_custom_call.1} parent=0
    #allocation2 [shape = 'u8[131072]{0}', space=vmem, size = 0x20000, scoped, tag = 'input window, operand 0, single buffered']
    #allocation3 [shape = 's32[1]{0}', space=sflag, size = 0x4, scoped, tag = 'scoped memory for tpu_custom_call.1']
    #allocation4 [shape = 's32[1]{0}', space=sflag, size = 0x4, scoped, tag = 'scoped memory for tpu_custom_call.1']
    #allocation5 [shape = 'u8[524288]{0}', space=vmem, size = 0x80000, scoped, tag = 'input window, operand 1, single buffered']
    #allocation6 [shape = 's32[1]{0}', space=sflag, size = 0x4, scoped, tag = 'scoped memory for tpu_custom_call.1']
    #allocation7 [shape = 'u8[32768]{0}', space=vmem, size = 0x8000, scoped, tag = 'input window, operand 3, single buffered']
    #allocation8 [shape = 'u8[32768]{0}', space=vmem, size = 0x8000, scoped, tag = 'input window, operand 5, single buffered']
    #allocation9 [shape = 's32[1]{0}', space=sflag, size = 0x4, scoped, tag = 'scoped memory for tpu_custom_call.1']
    #allocation10 [shape = 'u8[8192]{0}', space=vmem, size = 0x2000, scoped, tag = 'output window, operand 0, single buffered']
    %12 = vsyncpa [#allocation3], 0
    %13 = vsyncpa [#allocation6], 0
    %14 = vsyncpa [#allocation9], 0
    %15 = vsyncpa [#allocation4], 0
    // Predicated region
    $region2: #{tpu_custom_call.1} parent=1 // pred_check
      _
    $region3: #{tpu_custom_call.1} parent=1 // pred_check_branch
      %17 = sbr.rel (0) target = $region5
    $region4: #{tpu_custom_call.1} parent=1 // pred_region
      %s19 = ssub.s32 4096, 4096
      %20 = vsyncadd [#allocation3], %s19
      %s21 = sshll.u32 [#allocation2], 4
      %s22 = int_to_ptr.vmem [resolvable:$true] %s21
      %27 = dma.hbm_to_vmem [thread:$0]  %s0, 4096, %s22, [#allocation3], 2048, 2048, 128
    $region5: #{tpu_custom_call.1} parent=1 // pred_fallthru
      _
    // Predicated region
    $region6: #{tpu_custom_call.1} parent=1 // pred_check
      _
    $region7: #{tpu_custom_call.1} parent=1 // pred_check_branch
      %29 = sbr.rel (0) target = $region9
    $region8: #{tpu_custom_call.1} parent=1 // pred_region
      %s31 = ssub.s32 16384, 16384
      %32 = vsyncadd [#allocation6], %s31
      %s33 = sshll.u32 [#allocation5], 4
      %s34 = int_to_ptr.vmem [resolvable:$true] %s33
      %39 = dma.hbm_to_vmem [thread:$0]  %s1, 16384, %s34, [#allocation6], 64, 64, 4
    $region9: #{tpu_custom_call.1} parent=1 // pred_fallthru
      _
    // Predicated region
    $region10: #{tpu_custom_call.1} parent=1 // pred_check
      _
    $region11: #{tpu_custom_call.1} parent=1 // pred_check_branch
      %41 = sbr.rel (0) target = $region13
    $region12: #{tpu_custom_call.1} parent=1 // pred_region
      _
    $region13: #{tpu_custom_call.1} parent=1 // pred_fallthru
      _
    // Predicated region
    $region14: #{tpu_custom_call.1} parent=1 // pred_check
      _
    $region15: #{tpu_custom_call.1} parent=1 // pred_check_branch
      %43 = sbr.rel (0) target = $region17
    $region16: #{tpu_custom_call.1} parent=1 // pred_region
      %s45 = ssub.s32 1024, 1024
      %46 = vsyncadd [#allocation6], %s45
      %s47 = sshll.u32 [#allocation7], 4
      %s48 = int_to_ptr.vmem [resolvable:$true] %s47
      %53 = dma.hbm_to_vmem [thread:$0]  %s3, 1024, %s48, [#allocation6], 64, 64, 4
    $region17: #{tpu_custom_call.1} parent=1 // pred_fallthru
      _
    // Predicated region
    $region18: #{tpu_custom_call.1} parent=1 // pred_check
      _
    $region19: #{tpu_custom_call.1} parent=1 // pred_check_branch
      %55 = sbr.rel (0) target = $region21
    $region20: #{tpu_custom_call.1} parent=1 // pred_region
      _
    $region21: #{tpu_custom_call.1} parent=1 // pred_fallthru
      _
    // Predicated region
    $region22: #{tpu_custom_call.1} parent=1 // pred_check
      _
    $region23: #{tpu_custom_call.1} parent=1 // pred_check_branch
      %57 = sbr.rel (0) target = $region25
    $region24: #{tpu_custom_call.1} parent=1 // pred_region
      %s59 = ssub.s32 1024, 1024
      %60 = vsyncadd [#allocation9], %s59
      %s61 = sshll.u32 [#allocation8], 4
      %s62 = int_to_ptr.vmem [resolvable:$true] %s61
      %67 = dma.hbm_to_vmem [thread:$0]  %s5, 1024, %s62, [#allocation9], 64, 64, 4
    $region25: #{tpu_custom_call.1} parent=1 // pred_fallthru
      _
    // Predicated region
    $region26: #{tpu_custom_call.1} parent=1 // pred_check
      _
    $region27: #{tpu_custom_call.1} parent=1 // pred_check_branch
      %69 = sbr.rel (0) target = $region29
    $region28: #{tpu_custom_call.1} parent=1 // pred_region
      _
    $region29: #{tpu_custom_call.1} parent=1 // pred_fallthru
      _
    // Predicated region
    $region30: #{tpu_custom_call.1} parent=1 // pred_check
      _
    $region31: #{tpu_custom_call.1} parent=1 // pred_check_branch
      %71 = sbr.rel (0) target = $region33
    $region32: #{tpu_custom_call.1} parent=1 // pred_region
      %72 = dma.done [#allocation3], 4096
    $region33: #{tpu_custom_call.1} parent=1 // pred_fallthru
      _
    // Predicated region
    $region34: #{tpu_custom_call.1} parent=1 // pred_check
      _
    $region35: #{tpu_custom_call.1} parent=1 // pred_check_branch
      %74 = sbr.rel (0) target = $region37
    $region36: #{tpu_custom_call.1} parent=1 // pred_region
      %75 = dma.done [#allocation6], 16384
    $region37: #{tpu_custom_call.1} parent=1 // pred_fallthru
      _
    // Predicated region
    $region38: #{tpu_custom_call.1} parent=1 // pred_check
      _
    $region39: #{tpu_custom_call.1} parent=1 // pred_check_branch
      %77 = sbr.rel (0) target = $region41
    $region40: #{tpu_custom_call.1} parent=1 // pred_region
      %78 = dma.done [#allocation6], 1024
    $region41: #{tpu_custom_call.1} parent=1 // pred_fallthru
      _
    // Predicated region
    $region42: #{tpu_custom_call.1} parent=1 // pred_check
      _
    $region43: #{tpu_custom_call.1} parent=1 // pred_check_branch
      %80 = sbr.rel (0) target = $region45
    $region44: #{tpu_custom_call.1} parent=1 // pred_region
      %81 = dma.done [#allocation9], 1024
    $region45: #{tpu_custom_call.1} parent=1 // pred_fallthru
      _
    %v83 = vld [vmem:[#allocation2] sm:$0xff]
    %v84 = vld [vmem:[#allocation2 + $0x8] sm:$0xff]
    %v85 = vld [vmem:[#allocation2 + $0x10] sm:$0xff]
    %v86 = vld [vmem:[#allocation2 + $0x18] sm:$0xff]
    %v87 = vld [vmem:[#allocation2 + $0x20] sm:$0xff]
    %v88 = vld [vmem:[#allocation2 + $0x28] sm:$0xff]
    %v89 = vld [vmem:[#allocation2 + $0x30] sm:$0xff]
    %v90 = vld [vmem:[#allocation2 + $0x38] sm:$0xff]
    %v91 = vld [vmem:[#allocation2 + $0x40] sm:$0xff]
    %v92 = vld [vmem:[#allocation2 + $0x48] sm:$0xff]
    %v93 = vld [vmem:[#allocation2 + $0x50] sm:$0xff]
    %v94 = vld [vmem:[#allocation2 + $0x58] sm:$0xff]
    %v95 = vld [vmem:[#allocation2 + $0x60] sm:$0xff]
    %v96 = vld [vmem:[#allocation2 + $0x68] sm:$0xff]
    %v97 = vld [vmem:[#allocation2 + $0x70] sm:$0xff]
    %v98 = vld [vmem:[#allocation2 + $0x78] sm:$0xff]
    %v99 = vld [vmem:[#allocation2 + $0x80] sm:$0xff]
    %v100 = vld [vmem:[#allocation2 + $0x88] sm:$0xff]
    %v101 = vld [vmem:[#allocation2 + $0x90] sm:$0xff]
    %v102 = vld [vmem:[#allocation2 + $0x98] sm:$0xff]
    %v103 = vld [vmem:[#allocation2 + $0xa0] sm:$0xff]
    %v104 = vld [vmem:[#allocation2 + $0xa8] sm:$0xff]
    %v105 = vld [vmem:[#allocation2 + $0xb0] sm:$0xff]
    %v106 = vld [vmem:[#allocation2 + $0xb8] sm:$0xff]
    %v107 = vld [vmem:[#allocation2 + $0xc0] sm:$0xff]
    %v108 = vld [vmem:[#allocation2 + $0xc8] sm:$0xff]
    %v109 = vld [vmem:[#allocation2 + $0xd0] sm:$0xff]
    %v110 = vld [vmem:[#allocation2 + $0xd8] sm:$0xff]
    %v111 = vld [vmem:[#allocation2 + $0xe0] sm:$0xff]
    %v112 = vld [vmem:[#allocation2 + $0xe8] sm:$0xff]
    %v113 = vld [vmem:[#allocation2 + $0xf0] sm:$0xff]
    %v114 = vld [vmem:[#allocation2 + $0xf8] sm:$0xff]
    %v115 = vpack.c.bf16 %v99, %v83
    %v116 = vpack.c.bf16 %v100, %v84
    %v117 = vpack.c.bf16 %v101, %v85
    %v118 = vpack.c.bf16 %v102, %v86
    %v119 = vpack.c.bf16 %v103, %v87
    %v120 = vpack.c.bf16 %v104, %v88
    %v121 = vpack.c.bf16 %v105, %v89
    %v122 = vpack.c.bf16 %v106, %v90
    %v123 = vpack.c.bf16 %v107, %v91
    %v124 = vpack.c.bf16 %v108, %v92
    %v125 = vpack.c.bf16 %v109, %v93
    %v126 = vpack.c.bf16 %v110, %v94
    %v127 = vpack.c.bf16 %v111, %v95
    %v128 = vpack.c.bf16 %v112, %v96
    %v129 = vpack.c.bf16 %v113, %v97
    %v130 = vpack.c.bf16 %v114, %v98
    %v131 = vld [vmem:[#allocation5] sm:$0xf]
    %v132 = vld [vmem:[#allocation5 + $0x4] sm:$0xf]
    %v133 = vld [vmem:[#allocation5 + $0x8] sm:$0xf]
    %v134 = vld [vmem:[#allocation5 + $0xc] sm:$0xf]
    %v135 = vld [vmem:[#allocation5 + $0x10] sm:$0xf]
    %v136 = vld [vmem:[#allocation5 + $0x14] sm:$0xf]
    %v137 = vld [vmem:[#allocation5 + $0x18] sm:$0xf]
    %v138 = vld [vmem:[#allocation5 + $0x1c] sm:$0xf]
    %v139 = vld [vmem:[#allocation5 + $0x20] sm:$0xf]
    %v140 = vld [vmem:[#allocation5 + $0x24] sm:$0xf]
    %v141 = vld [vmem:[#allocation5 + $0x28] sm:$0xf]
    %v142 = vld [vmem:[#allocation5 + $0x2c] sm:$0xf]
    %v143 = vld [vmem:[#allocation5 + $0x30] sm:$0xf]
    %v144 = vld [vmem:[#allocation5 + $0x34] sm:$0xf]
    %v145 = vld [vmem:[#allocation5 + $0x38] sm:$0xf]
    %v146 = vld [vmem:[#allocation5 + $0x3c] sm:$0xf]
    %v147 = vld [vmem:[#allocation5 + $0x40] sm:$0xf]
    %v148 = vld [vmem:[#allocation5 + $0x44] sm:$0xf]
    %v149 = vld [vmem:[#allocation5 + $0x48] sm:$0xf]
    %v150 = vld [vmem:[#allocation5 + $0x4c] sm:$0xf]
    %v151 = vld [vmem:[#allocation5 + $0x50] sm:$0xf]
    %v152 = vld [vmem:[#allocation5 + $0x54] sm:$0xf]
    %v153 = vld [vmem:[#allocation5 + $0x58] sm:$0xf]
    %v154 = vld [vmem:[#allocation5 + $0x5c] sm:$0xf]
    %v155 = vld [vmem:[#allocation5 + $0x60] sm:$0xf]
    %v156 = vld [vmem:[#allocation5 + $0x64] sm:$0xf]
    %v157 = vld [vmem:[#allocation5 + $0x68] sm:$0xf]
    %v158 = vld [vmem:[#allocation5 + $0x6c] sm:$0xf]
    %v159 = vld [vmem:[#allocation5 + $0x70] sm:$0xf]
    %v160 = vld [vmem:[#allocation5 + $0x74] sm:$0xf]
    %v161 = vld [vmem:[#allocation5 + $0x78] sm:$0xf]
    %v162 = vld [vmem:[#allocation5 + $0x7c] sm:$0xf]
    %v163 = vld [vmem:[#allocation5 + $0x80] sm:$0xf]
    %v164 = vld [vmem:[#allocation5 + $0x84] sm:$0xf]
    %v165 = vld [vmem:[#allocation5 + $0x88] sm:$0xf]
    %v166 = vld [vmem:[#allocation5 + $0x8c] sm:$0xf]
    %v167 = vld [vmem:[#allocation5 + $0x90] sm:$0xf]
    %v168 = vld [vmem:[#allocation5 + $0x94] sm:$0xf]
    %v169 = vld [vmem:[#allocation5 + $0x98] sm:$0xf]
    %v170 = vld [vmem:[#allocation5 + $0x9c] sm:$0xf]
    %v171 = vld [vmem:[#allocation5 + $0xa0] sm:$0xf]
    %v172 = vld [vmem:[#allocation5 + $0xa4] sm:$0xf]
    %v173 = vld [vmem:[#allocation5 + $0xa8] sm:$0xf]
    %v174 = vld [vmem:[#allocation5 + $0xac] sm:$0xf]
    %v175 = vld [vmem:[#allocation5 + $0xb0] sm:$0xf]
    %v176 = vld [vmem:[#allocation5 + $0xb4] sm:$0xf]
    %v177 = vld [vmem:[#allocation5 + $0xb8] sm:$0xf]
    %v178 = vld [vmem:[#allocation5 + $0xbc] sm:$0xf]
    %v179 = vld [vmem:[#allocation5 + $0xc0] sm:$0xf]
    %v180 = vld [vmem:[#allocation5 + $0xc4] sm:$0xf]
    %v181 = vld [vmem:[#allocation5 + $0xc8] sm:$0xf]
    %v182 = vld [vmem:[#allocation5 + $0xcc] sm:$0xf]
    %v183 = vld [vmem:[#allocation5 + $0xd0] sm:$0xf]
    %v184 = vld [vmem:[#allocation5 + $0xd4] sm:$0xf]
    %v185 = vld [vmem:[#allocation5 + $0xd8] sm:$0xf]
    %v186 = vld [vmem:[#allocation5 + $0xdc] sm:$0xf]
    %v187 = vld [vmem:[#allocation5 + $0xe0] sm:$0xf]
    %v188 = vld [vmem:[#allocation5 + $0xe4] sm:$0xf]
    %v189 = vld [vmem:[#allocation5 + $0xe8] sm:$0xf]
    %v190 = vld [vmem:[#allocation5 + $0xec] sm:$0xf]
    %v191 = vld [vmem:[#allocation5 + $0xf0] sm:$0xf]
    %v192 = vld [vmem:[#allocation5 + $0xf4] sm:$0xf]
    %v193 = vld [vmem:[#allocation5 + $0xf8] sm:$0xf]
    %v194 = vld [vmem:[#allocation5 + $0xfc] sm:$0xf]
    %v195 = vld [vmem:[#allocation5 + $0x100] sm:$0xf]
    %v196 = vld [vmem:[#allocation5 + $0x104] sm:$0xf]
    %v197 = vld [vmem:[#allocation5 + $0x108] sm:$0xf]
    %v198 = vld [vmem:[#allocation5 + $0x10c] sm:$0xf]
    %v199 = vld [vmem:[#allocation5 + $0x110] sm:$0xf]
    %v200 = vld [vmem:[#allocation5 + $0x114] sm:$0xf]
    %v201 = vld [vmem:[#allocation5 + $0x118] sm:$0xf]
    %v202 = vld [vmem:[#allocation5 + $0x11c] sm:$0xf]
    %v203 = vld [vmem:[#allocation5 + $0x120] sm:$0xf]
    %v204 = vld [vmem:[#allocation5 + $0x124] sm:$0xf]
    %v205 = vld [vmem:[#allocation5 + $0x128] sm:$0xf]
    %v206 = vld [vmem:[#allocation5 + $0x12c] sm:$0xf]
    %v207 = vld [vmem:[#allocation5 + $0x130] sm:$0xf]
    %v208 = vld [vmem:[#allocation5 + $0x134] sm:$0xf]
    %v209 = vld [vmem:[#allocation5 + $0x138] sm:$0xf]
    %v210 = vld [vmem:[#allocation5 + $0x13c] sm:$0xf]
    %v211 = vld [vmem:[#allocation5 + $0x140] sm:$0xf]
    %v212 = vld [vmem:[#allocation5 + $0x144] sm:$0xf]
    %v213 = vld [vmem:[#allocation5 + $0x148] sm:$0xf]
    %v214 = vld [vmem:[#allocation5 + $0x14c] sm:$0xf]
    %v215 = vld [vmem:[#allocation5 + $0x150] sm:$0xf]
    %v216 = vld [vmem:[#allocation5 + $0x154] sm:$0xf]
    %v217 = vld [vmem:[#allocation5 + $0x158] sm:$0xf]
    %v218 = vld [vmem:[#allocation5 + $0x15c] sm:$0xf]
    %v219 = vld [vmem:[#allocation5 + $0x160] sm:$0xf]
    %v220 = vld [vmem:[#allocation5 + $0x164] sm:$0xf]
    %v221 = vld [vmem:[#allocation5 + $0x168] sm:$0xf]
    %v222 = vld [vmem:[#allocation5 + $0x16c] sm:$0xf]
    %v223 = vld [vmem:[#allocation5 + $0x170] sm:$0xf]
    %v224 = vld [vmem:[#allocation5 + $0x174] sm:$0xf]
    %v225 = vld [vmem:[#allocation5 + $0x178] sm:$0xf]
    %v226 = vld [vmem:[#allocation5 + $0x17c] sm:$0xf]
    %v227 = vld [vmem:[#allocation5 + $0x180] sm:$0xf]
    %v228 = vld [vmem:[#allocation5 + $0x184] sm:$0xf]
    %v229 = vld [vmem:[#allocation5 + $0x188] sm:$0xf]
    %v230 = vld [vmem:[#allocation5 + $0x18c] sm:$0xf]
    %v231 = vld [vmem:[#allocation5 + $0x190] sm:$0xf]
    %v232 = vld [vmem:[#allocation5 + $0x194] sm:$0xf]
    %v233 = vld [vmem:[#allocation5 + $0x198] sm:$0xf]
    %v234 = vld [vmem:[#allocation5 + $0x19c] sm:$0xf]
    %v235 = vld [vmem:[#allocation5 + $0x1a0] sm:$0xf]
    %v236 = vld [vmem:[#allocation5 + $0x1a4] sm:$0xf]
    %v237 = vld [vmem:[#allocation5 + $0x1a8] sm:$0xf]
    %v238 = vld [vmem:[#allocation5 + $0x1ac] sm:$0xf]
    %v239 = vld [vmem:[#allocation5 + $0x1b0] sm:$0xf]
    %v240 = vld [vmem:[#allocation5 + $0x1b4] sm:$0xf]
    %v241 = vld [vmem:[#allocation5 + $0x1b8] sm:$0xf]
    %v242 = vld [vmem:[#allocation5 + $0x1bc] sm:$0xf]
    %v243 = vld [vmem:[#allocation5 + $0x1c0] sm:$0xf]
    %v244 = vld [vmem:[#allocation5 + $0x1c4] sm:$0xf]
    %v245 = vld [vmem:[#allocation5 + $0x1c8] sm:$0xf]
    %v246 = vld [vmem:[#allocation5 + $0x1cc] sm:$0xf]
    %v247 = vld [vmem:[#allocation5 + $0x1d0] sm:$0xf]
    %v248 = vld [vmem:[#allocation5 + $0x1d4] sm:$0xf]
    %v249 = vld [vmem:[#allocation5 + $0x1d8] sm:$0xf]
    %v250 = vld [vmem:[#allocation5 + $0x1dc] sm:$0xf]
    %v251 = vld [vmem:[#allocation5 + $0x1e0] sm:$0xf]
    %v252 = vld [vmem:[#allocation5 + $0x1e4] sm:$0xf]
    %v253 = vld [vmem:[#allocation5 + $0x1e8] sm:$0xf]
    %v254 = vld [vmem:[#allocation5 + $0x1ec] sm:$0xf]
    %v255 = vld [vmem:[#allocation5 + $0x1f0] sm:$0xf]
    %v256 = vld [vmem:[#allocation5 + $0x1f4] sm:$0xf]
    %v257 = vld [vmem:[#allocation5 + $0x1f8] sm:$0xf]
    %v258 = vld [vmem:[#allocation5 + $0x1fc] sm:$0xf]
    %v259 = vld [vmem:[#allocation5 + $0x200] sm:$0xf]
    %v260 = vld [vmem:[#allocation5 + $0x204] sm:$0xf]
    %v261 = vld [vmem:[#allocation5 + $0x208] sm:$0xf]
    %v262 = vld [vmem:[#allocation5 + $0x20c] sm:$0xf]
    %v263 = vld [vmem:[#allocation5 + $0x210] sm:$0xf]
    %v264 = vld [vmem:[#allocation5 + $0x214] sm:$0xf]
    %v265 = vld [vmem:[#allocation5 + $0x218] sm:$0xf]
    %v266 = vld [vmem:[#allocation5 + $0x21c] sm:$0xf]
    %v267 = vld [vmem:[#allocation5 + $0x220] sm:$0xf]
    %v268 = vld [vmem:[#allocation5 + $0x224] sm:$0xf]
    %v269 = vld [vmem:[#allocation5 + $0x228] sm:$0xf]
    %v270 = vld [vmem:[#allocation5 + $0x22c] sm:$0xf]
    %v271 = vld [vmem:[#allocation5 + $0x230] sm:$0xf]
    %v272 = vld [vmem:[#allocation5 + $0x234] sm:$0xf]
    %v273 = vld [vmem:[#allocation5 + $0x238] sm:$0xf]
    %v274 = vld [vmem:[#allocation5 + $0x23c] sm:$0xf]
    %v275 = vld [vmem:[#allocation5 + $0x240] sm:$0xf]
    %v276 = vld [vmem:[#allocation5 + $0x244] sm:$0xf]
    %v277 = vld [vmem:[#allocation5 + $0x248] sm:$0xf]
    %v278 = vld [vmem:[#allocation5 + $0x24c] sm:$0xf]
    %v279 = vld [vmem:[#allocation5 + $0x250] sm:$0xf]
    %v280 = vld [vmem:[#allocation5 + $0x254] sm:$0xf]
    %v281 = vld [vmem:[#allocation5 + $0x258] sm:$0xf]
    %v282 = vld [vmem:[#allocation5 + $0x25c] sm:$0xf]
    %v283 = vld [vmem:[#allocation5 + $0x260] sm:$0xf]
    %v284 = vld [vmem:[#allocation5 + $0x264] sm:$0xf]
    %v285 = vld [vmem:[#allocation5 + $0x268] sm:$0xf]
    %v286 = vld [vmem:[#allocation5 + $0x26c] sm:$0xf]
    %v287 = vld [vmem:[#allocation5 + $0x270] sm:$0xf]
    %v288 = vld [vmem:[#allocation5 + $0x274] sm:$0xf]
    %v289 = vld [vmem:[#allocation5 + $0x278] sm:$0xf]
    %v290 = vld [vmem:[#allocation5 + $0x27c] sm:$0xf]
    %v291 = vld [vmem:[#allocation5 + $0x280] sm:$0xf]
    %v292 = vld [vmem:[#allocation5 + $0x284] sm:$0xf]
    %v293 = vld [vmem:[#allocation5 + $0x288] sm:$0xf]
    %v294 = vld [vmem:[#allocation5 + $0x28c] sm:$0xf]
    %v295 = vld [vmem:[#allocation5 + $0x290] sm:$0xf]
    %v296 = vld [vmem:[#allocation5 + $0x294] sm:$0xf]
    %v297 = vld [vmem:[#allocation5 + $0x298] sm:$0xf]
    %v298 = vld [vmem:[#allocation5 + $0x29c] sm:$0xf]
    %v299 = vld [vmem:[#allocation5 + $0x2a0] sm:$0xf]
    %v300 = vld [vmem:[#allocation5 + $0x2a4] sm:$0xf]
    %v301 = vld [vmem:[#allocation5 + $0x2a8] sm:$0xf]
    %v302 = vld [vmem:[#allocation5 + $0x2ac] sm:$0xf]
    %v303 = vld [vmem:[#allocation5 + $0x2b0] sm:$0xf]
    %v304 = vld [vmem:[#allocation5 + $0x2b4] sm:$0xf]
    %v305 = vld [vmem:[#allocation5 + $0x2b8] sm:$0xf]
    %v306 = vld [vmem:[#allocation5 + $0x2bc] sm:$0xf]
    %v307 = vld [vmem:[#allocation5 + $0x2c0] sm:$0xf]
    %v308 = vld [vmem:[#allocation5 + $0x2c4] sm:$0xf]
    %v309 = vld [vmem:[#allocation5 + $0x2c8] sm:$0xf]
    %v310 = vld [vmem:[#allocation5 + $0x2cc] sm:$0xf]
    %v311 = vld [vmem:[#allocation5 + $0x2d0] sm:$0xf]
    %v312 = vld [vmem:[#allocation5 + $0x2d4] sm:$0xf]
    %v313 = vld [vmem:[#allocation5 + $0x2d8] sm:$0xf]
    %v314 = vld [vmem:[#allocation5 + $0x2dc] sm:$0xf]
    %v315 = vld [vmem:[#allocation5 + $0x2e0] sm:$0xf]
    %v316 = vld [vmem:[#allocation5 + $0x2e4] sm:$0xf]
    %v317 = vld [vmem:[#allocation5 + $0x2e8] sm:$0xf]
    %v318 = vld [vmem:[#allocation5 + $0x2ec] sm:$0xf]
    %v319 = vld [vmem:[#allocation5 + $0x2f0] sm:$0xf]
    %v320 = vld [vmem:[#allocation5 + $0x2f4] sm:$0xf]
    %v321 = vld [vmem:[#allocation5 + $0x2f8] sm:$0xf]
    %v322 = vld [vmem:[#allocation5 + $0x2fc] sm:$0xf]
    %v323 = vld [vmem:[#allocation5 + $0x300] sm:$0xf]
    %v324 = vld [vmem:[#allocation5 + $0x304] sm:$0xf]
    %v325 = vld [vmem:[#allocation5 + $0x308] sm:$0xf]
    %v326 = vld [vmem:[#allocation5 + $0x30c] sm:$0xf]
    %v327 = vld [vmem:[#allocation5 + $0x310] sm:$0xf]
    %v328 = vld [vmem:[#allocation5 + $0x314] sm:$0xf]
    %v329 = vld [vmem:[#allocation5 + $0x318] sm:$0xf]
    %v330 = vld [vmem:[#allocation5 + $0x31c] sm:$0xf]
    %v331 = vld [vmem:[#allocation5 + $0x320] sm:$0xf]
    %v332 = vld [vmem:[#allocation5 + $0x324] sm:$0xf]
    %v333 = vld [vmem:[#allocation5 + $0x328] sm:$0xf]
    %v334 = vld [vmem:[#allocation5 + $0x32c] sm:$0xf]
    %v335 = vld [vmem:[#allocation5 + $0x330] sm:$0xf]
    %v336 = vld [vmem:[#allocation5 + $0x334] sm:$0xf]
    %v337 = vld [vmem:[#allocation5 + $0x338] sm:$0xf]
    %v338 = vld [vmem:[#allocation5 + $0x33c] sm:$0xf]
    %v339 = vld [vmem:[#allocation5 + $0x340] sm:$0xf]
    %v340 = vld [vmem:[#allocation5 + $0x344] sm:$0xf]
    %v341 = vld [vmem:[#allocation5 + $0x348] sm:$0xf]
    %v342 = vld [vmem:[#allocation5 + $0x34c] sm:$0xf]
    %v343 = vld [vmem:[#allocation5 + $0x350] sm:$0xf]
    %v344 = vld [vmem:[#allocation5 + $0x354] sm:$0xf]
    %v345 = vld [vmem:[#allocation5 + $0x358] sm:$0xf]
    %v346 = vld [vmem:[#allocation5 + $0x35c] sm:$0xf]
    %v347 = vld [vmem:[#allocation5 + $0x360] sm:$0xf]
    %v348 = vld [vmem:[#allocation5 + $0x364] sm:$0xf]
    %v349 = vld [vmem:[#allocation5 + $0x368] sm:$0xf]
    %v350 = vld [vmem:[#allocation5 + $0x36c] sm:$0xf]
    %v351 = vld [vmem:[#allocation5 + $0x370] sm:$0xf]
    %v352 = vld [vmem:[#allocation5 + $0x374] sm:$0xf]
    %v353 = vld [vmem:[#allocation5 + $0x378] sm:$0xf]
    %v354 = vld [vmem:[#allocation5 + $0x37c] sm:$0xf]
    %v355 = vld [vmem:[#allocation5 + $0x380] sm:$0xf]
    %v356 = vld [vmem:[#allocation5 + $0x384] sm:$0xf]
    %v357 = vld [vmem:[#allocation5 + $0x388] sm:$0xf]
    %v358 = vld [vmem:[#allocation5 + $0x38c] sm:$0xf]
    %v359 = vld [vmem:[#allocation5 + $0x390] sm:$0xf]
    %v360 = vld [vmem:[#allocation5 + $0x394] sm:$0xf]
    %v361 = vld [vmem:[#allocation5 + $0x398] sm:$0xf]
    %v362 = vld [vmem:[#allocation5 + $0x39c] sm:$0xf]
    %v363 = vld [vmem:[#allocation5 + $0x3a0] sm:$0xf]
    %v364 = vld [vmem:[#allocation5 + $0x3a4] sm:$0xf]
    %v365 = vld [vmem:[#allocation5 + $0x3a8] sm:$0xf]
    %v366 = vld [vmem:[#allocation5 + $0x3ac] sm:$0xf]
    %v367 = vld [vmem:[#allocation5 + $0x3b0] sm:$0xf]
    %v368 = vld [vmem:[#allocation5 + $0x3b4] sm:$0xf]
    %v369 = vld [vmem:[#allocation5 + $0x3b8] sm:$0xf]
    %v370 = vld [vmem:[#allocation5 + $0x3bc] sm:$0xf]
    %v371 = vld [vmem:[#allocation5 + $0x3c0] sm:$0xf]
    %v372 = vld [vmem:[#allocation5 + $0x3c4] sm:$0xf]
    %v373 = vld [vmem:[#allocation5 + $0x3c8] sm:$0xf]
    %v374 = vld [vmem:[#allocation5 + $0x3cc] sm:$0xf]
    %v375 = vld [vmem:[#allocation5 + $0x3d0] sm:$0xf]
    %v376 = vld [vmem:[#allocation5 + $0x3d4] sm:$0xf]
    %v377 = vld [vmem:[#allocation5 + $0x3d8] sm:$0xf]
    %v378 = vld [vmem:[#allocation5 + $0x3dc] sm:$0xf]
    %v379 = vld [vmem:[#allocation5 + $0x3e0] sm:$0xf]
    %v380 = vld [vmem:[#allocation5 + $0x3e4] sm:$0xf]
    %v381 = vld [vmem:[#allocation5 + $0x3e8] sm:$0xf]
    %v382 = vld [vmem:[#allocation5 + $0x3ec] sm:$0xf]
    %v383 = vld [vmem:[#allocation5 + $0x3f0] sm:$0xf]
    %v384 = vld [vmem:[#allocation5 + $0x3f4] sm:$0xf]
    %v385 = vld [vmem:[#allocation5 + $0x3f8] sm:$0xf]
    %v386 = vld [vmem:[#allocation5 + $0x3fc] sm:$0xf]
    %v387 = vld [vmem:[%s2] sm:$0x1]
    %v389 = vlaneseq
    %v390 = vshrl.u32 %v389, 7
    %v391 = vsub.s32 0, %v390
    %v392 = vrot.slane %v387, %v391
    %v650 = vunpack.c.l.b16 %v131
    %v651 = vunpack.c.l.b16 %v132
    %v652 = vunpack.c.l.b16 %v133
    %v653 = vunpack.c.l.b16 %v134
    %v654 = vunpack.c.l.b16 %v135
    %v655 = vunpack.c.l.b16 %v136
    %v656 = vunpack.c.l.b16 %v137
    %v657 = vunpack.c.l.b16 %v138
    %v658 = vunpack.c.l.b16 %v139
    %v659 = vunpack.c.l.b16 %v140
    %v660 = vunpack.c.l.b16 %v141
    %v661 = vunpack.c.l.b16 %v142
    %v662 = vunpack.c.l.b16 %v143
    %v663 = vunpack.c.l.b16 %v144
    %v664 = vunpack.c.l.b16 %v145
    %v665 = vunpack.c.l.b16 %v146
    %v666 = vunpack.c.l.b16 %v147
    %v667 = vunpack.c.l.b16 %v148
    %v668 = vunpack.c.l.b16 %v149
    %v669 = vunpack.c.l.b16 %v150
    %v670 = vunpack.c.l.b16 %v151
    %v671 = vunpack.c.l.b16 %v152
    %v672 = vunpack.c.l.b16 %v153
    %v673 = vunpack.c.l.b16 %v154
    %v674 = vunpack.c.l.b16 %v155
    %v675 = vunpack.c.l.b16 %v156
    %v676 = vunpack.c.l.b16 %v157
    %v677 = vunpack.c.l.b16 %v158
    %v678 = vunpack.c.l.b16 %v159
    %v679 = vunpack.c.l.b16 %v160
    %v680 = vunpack.c.l.b16 %v161
    %v681 = vunpack.c.l.b16 %v162
    %v682 = vunpack.c.l.b16 %v163
    %v683 = vunpack.c.l.b16 %v164
    %v684 = vunpack.c.l.b16 %v165
    %v685 = vunpack.c.l.b16 %v166
    %v686 = vunpack.c.l.b16 %v167
    %v687 = vunpack.c.l.b16 %v168
    %v688 = vunpack.c.l.b16 %v169
    %v689 = vunpack.c.l.b16 %v170
    %v690 = vunpack.c.l.b16 %v171
    %v691 = vunpack.c.l.b16 %v172
    %v692 = vunpack.c.l.b16 %v173
    %v693 = vunpack.c.l.b16 %v174
    %v694 = vunpack.c.l.b16 %v175
    %v695 = vunpack.c.l.b16 %v176
    %v696 = vunpack.c.l.b16 %v177
    %v697 = vunpack.c.l.b16 %v178
    %v698 = vunpack.c.l.b16 %v179
    %v699 = vunpack.c.l.b16 %v180
    %v700 = vunpack.c.l.b16 %v181
    %v701 = vunpack.c.l.b16 %v182
    %v702 = vunpack.c.l.b16 %v183
    %v703 = vunpack.c.l.b16 %v184
    %v704 = vunpack.c.l.b16 %v185
    %v705 = vunpack.c.l.b16 %v186
    %v706 = vunpack.c.l.b16 %v187
    %v707 = vunpack.c.l.b16 %v188
    %v708 = vunpack.c.l.b16 %v189
    %v709 = vunpack.c.l.b16 %v190
    %v710 = vunpack.c.l.b16 %v191
    %v711 = vunpack.c.l.b16 %v192
    %v712 = vunpack.c.l.b16 %v193
    %v713 = vunpack.c.l.b16 %v194
    %v714 = vunpack.c.l.b16 %v195
    %v715 = vunpack.c.l.b16 %v196
    %v716 = vunpack.c.l.b16 %v197
    %v717 = vunpack.c.l.b16 %v198
    %v718 = vunpack.c.l.b16 %v199
    %v719 = vunpack.c.l.b16 %v200
    %v720 = vunpack.c.l.b16 %v201
    %v721 = vunpack.c.l.b16 %v202
    %v722 = vunpack.c.l.b16 %v203
    %v723 = vunpack.c.l.b16 %v204
    %v724 = vunpack.c.l.b16 %v205
    %v725 = vunpack.c.l.b16 %v206
    %v726 = vunpack.c.l.b16 %v207
    %v727 = vunpack.c.l.b16 %v208
    %v728 = vunpack.c.l.b16 %v209
    %v729 = vunpack.c.l.b16 %v210
    %v730 = vunpack.c.l.b16 %v211
    %v731 = vunpack.c.l.b16 %v212
    %v732 = vunpack.c.l.b16 %v213
    %v733 = vunpack.c.l.b16 %v214
    %v734 = vunpack.c.l.b16 %v215
    %v735 = vunpack.c.l.b16 %v216
    %v736 = vunpack.c.l.b16 %v217
    %v737 = vunpack.c.l.b16 %v218
    %v738 = vunpack.c.l.b16 %v219
    %v739 = vunpack.c.l.b16 %v220
    %v740 = vunpack.c.l.b16 %v221
    %v741 = vunpack.c.l.b16 %v222
    %v742 = vunpack.c.l.b16 %v223
    %v743 = vunpack.c.l.b16 %v224
    %v744 = vunpack.c.l.b16 %v225
    %v745 = vunpack.c.l.b16 %v226
    %v746 = vunpack.c.l.b16 %v227
    %v747 = vunpack.c.l.b16 %v228
    %v748 = vunpack.c.l.b16 %v229
    %v749 = vunpack.c.l.b16 %v230
    %v750 = vunpack.c.l.b16 %v231
    %v751 = vunpack.c.l.b16 %v232
    %v752 = vunpack.c.l.b16 %v233
    %v753 = vunpack.c.l.b16 %v234
    %v754 = vunpack.c.l.b16 %v235
    %v755 = vunpack.c.l.b16 %v236
    %v756 = vunpack.c.l.b16 %v237
    %v757 = vunpack.c.l.b16 %v238
    %v758 = vunpack.c.l.b16 %v239
    %v759 = vunpack.c.l.b16 %v240
    %v760 = vunpack.c.l.b16 %v241
    %v761 = vunpack.c.l.b16 %v242
    %v762 = vunpack.c.l.b16 %v243
    %v763 = vunpack.c.l.b16 %v244
    %v764 = vunpack.c.l.b16 %v245
    %v765 = vunpack.c.l.b16 %v246
    %v766 = vunpack.c.l.b16 %v247
    %v767 = vunpack.c.l.b16 %v248
    %v768 = vunpack.c.l.b16 %v249
    %v769 = vunpack.c.l.b16 %v250
    %v770 = vunpack.c.l.b16 %v251
    %v771 = vunpack.c.l.b16 %v252
    %v772 = vunpack.c.l.b16 %v253
    %v773 = vunpack.c.l.b16 %v254
    %v774 = vunpack.c.l.b16 %v255
    %v775 = vunpack.c.l.b16 %v256
    %v776 = vunpack.c.l.b16 %v257
    %v777 = vunpack.c.l.b16 %v258
    %v778 = vunpack.c.l.b16 %v259
    %v779 = vunpack.c.l.b16 %v260
    %v780 = vunpack.c.l.b16 %v261
    %v781 = vunpack.c.l.b16 %v262
    %v782 = vunpack.c.l.b16 %v263
    %v783 = vunpack.c.l.b16 %v264
    %v784 = vunpack.c.l.b16 %v265
    %v785 = vunpack.c.l.b16 %v266
    %v786 = vunpack.c.l.b16 %v267
    %v787 = vunpack.c.l.b16 %v268
    %v788 = vunpack.c.l.b16 %v269
    %v789 = vunpack.c.l.b16 %v270
    %v790 = vunpack.c.l.b16 %v271
    %v791 = vunpack.c.l.b16 %v272
    %v792 = vunpack.c.l.b16 %v273
    %v793 = vunpack.c.l.b16 %v274
    %v794 = vunpack.c.l.b16 %v275
    %v795 = vunpack.c.l.b16 %v276
    %v796 = vunpack.c.l.b16 %v277
    %v797 = vunpack.c.l.b16 %v278
    %v798 = vunpack.c.l.b16 %v279
    %v799 = vunpack.c.l.b16 %v280
    %v800 = vunpack.c.l.b16 %v281
    %v801 = vunpack.c.l.b16 %v282
    %v802 = vunpack.c.l.b16 %v283
    %v803 = vunpack.c.l.b16 %v284
    %v804 = vunpack.c.l.b16 %v285
    %v805 = vunpack.c.l.b16 %v286
    %v806 = vunpack.c.l.b16 %v287
    %v807 = vunpack.c.l.b16 %v288
    %v808 = vunpack.c.l.b16 %v289
    %v809 = vunpack.c.l.b16 %v290
    %v810 = vunpack.c.l.b16 %v291
    %v811 = vunpack.c.l.b16 %v292
    %v812 = vunpack.c.l.b16 %v293
    %v813 = vunpack.c.l.b16 %v294
    %v814 = vunpack.c.l.b16 %v295
    %v815 = vunpack.c.l.b16 %v296
    %v816 = vunpack.c.l.b16 %v297
    %v817 = vunpack.c.l.b16 %v298
    %v818 = vunpack.c.l.b16 %v299
    %v819 = vunpack.c.l.b16 %v300
    %v820 = vunpack.c.l.b16 %v301
    %v821 = vunpack.c.l.b16 %v302
    %v822 = vunpack.c.l.b16 %v303
    %v823 = vunpack.c.l.b16 %v304
    %v824 = vunpack.c.l.b16 %v305
    %v825 = vunpack.c.l.b16 %v306
    %v826 = vunpack.c.l.b16 %v307
    %v827 = vunpack.c.l.b16 %v308
    %v828 = vunpack.c.l.b16 %v309
    %v829 = vunpack.c.l.b16 %v310
    %v830 = vunpack.c.l.b16 %v311
    %v831 = vunpack.c.l.b16 %v312
    %v832 = vunpack.c.l.b16 %v313
    %v833 = vunpack.c.l.b16 %v314
    %v834 = vunpack.c.l.b16 %v315
    %v835 = vunpack.c.l.b16 %v316
    %v836 = vunpack.c.l.b16 %v317
    %v837 = vunpack.c.l.b16 %v318
    %v838 = vunpack.c.l.b16 %v319
    %v839 = vunpack.c.l.b16 %v320
    %v840 = vunpack.c.l.b16 %v321
    %v841 = vunpack.c.l.b16 %v322
    %v842 = vunpack.c.l.b16 %v323
    %v843 = vunpack.c.l.b16 %v324
    %v844 = vunpack.c.l.b16 %v325
    %v845 = vunpack.c.l.b16 %v326
    %v846 = vunpack.c.l.b16 %v327
    %v847 = vunpack.c.l.b16 %v328
    %v848 = vunpack.c.l.b16 %v329
    %v849 = vunpack.c.l.b16 %v330
    %v850 = vunpack.c.l.b16 %v331
    %v851 = vunpack.c.l.b16 %v332
    %v852 = vunpack.c.l.b16 %v333
    %v853 = vunpack.c.l.b16 %v334
    %v854 = vunpack.c.l.b16 %v335
    %v855 = vunpack.c.l.b16 %v336
    %v856 = vunpack.c.l.b16 %v337
    %v857 = vunpack.c.l.b16 %v338
    %v858 = vunpack.c.l.b16 %v339
    %v859 = vunpack.c.l.b16 %v340
    %v860 = vunpack.c.l.b16 %v341
    %v861 = vunpack.c.l.b16 %v342
    %v862 = vunpack.c.l.b16 %v343
    %v863 = vunpack.c.l.b16 %v344
    %v864 = vunpack.c.l.b16 %v345
    %v865 = vunpack.c.l.b16 %v346
    %v866 = vunpack.c.l.b16 %v347
    %v867 = vunpack.c.l.b16 %v348
    %v868 = vunpack.c.l.b16 %v349
    %v869 = vunpack.c.l.b16 %v350
    %v870 = vunpack.c.l.b16 %v351
    %v871 = vunpack.c.l.b16 %v352
    %v872 = vunpack.c.l.b16 %v353
    %v873 = vunpack.c.l.b16 %v354
    %v874 = vunpack.c.l.b16 %v355
    %v875 = vunpack.c.l.b16 %v356
    %v876 = vunpack.c.l.b16 %v357
    %v877 = vunpack.c.l.b16 %v358
    %v878 = vunpack.c.l.b16 %v359
    %v879 = vunpack.c.l.b16 %v360
    %v880 = vunpack.c.l.b16 %v361
    %v881 = vunpack.c.l.b16 %v362
    %v882 = vunpack.c.l.b16 %v363
    %v883 = vunpack.c.l.b16 %v364
    %v884 = vunpack.c.l.b16 %v365
    %v885 = vunpack.c.l.b16 %v366
    %v886 = vunpack.c.l.b16 %v367
    %v887 = vunpack.c.l.b16 %v368
    %v888 = vunpack.c.l.b16 %v369
    %v889 = vunpack.c.l.b16 %v370
    %v890 = vunpack.c.l.b16 %v371
    %v891 = vunpack.c.l.b16 %v372
    %v892 = vunpack.c.l.b16 %v373
    %v893 = vunpack.c.l.b16 %v374
    %v894 = vunpack.c.l.b16 %v375
    %v895 = vunpack.c.l.b16 %v376
    %v896 = vunpack.c.l.b16 %v377
    %v897 = vunpack.c.l.b16 %v378
    %v898 = vunpack.c.l.b16 %v379
    %v899 = vunpack.c.l.b16 %v380
    %v900 = vunpack.c.l.b16 %v381
    %v901 = vunpack.c.l.b16 %v382
    %v902 = vunpack.c.l.b16 %v383
    %v903 = vunpack.c.l.b16 %v384
    %v904 = vunpack.c.l.b16 %v385
    %v905 = vunpack.c.l.b16 %v386
    %v906 = vpack.c.b16 %v651, %v650
    %v907 = vpack.c.b16 %v653, %v652
    %v908 = vpack.c.b16 %v655, %v654
    %v909 = vpack.c.b16 %v657, %v656
    %v910 = vpack.c.b16 %v659, %v658
    %v911 = vpack.c.b16 %v661, %v660
    %v912 = vpack.c.b16 %v663, %v662
    %v913 = vpack.c.b16 %v665, %v664
    %v914 = vpack.c.b16 %v667, %v666
    %v915 = vpack.c.b16 %v669, %v668
    %v916 = vpack.c.b16 %v671, %v670
    %v917 = vpack.c.b16 %v673, %v672
    %v918 = vpack.c.b16 %v675, %v674
    %v919 = vpack.c.b16 %v677, %v676
    %v920 = vpack.c.b16 %v679, %v678
    %v921 = vpack.c.b16 %v681, %v680
    %v922 = vpack.c.b16 %v683, %v682
    %v923 = vpack.c.b16 %v685, %v684
    %v924 = vpack.c.b16 %v687, %v686
    %v925 = vpack.c.b16 %v689, %v688
    %v926 = vpack.c.b16 %v691, %v690
    %v927 = vpack.c.b16 %v693, %v692
    %v928 = vpack.c.b16 %v695, %v694
    %v929 = vpack.c.b16 %v697, %v696
    %v930 = vpack.c.b16 %v699, %v698
    %v931 = vpack.c.b16 %v701, %v700
    %v932 = vpack.c.b16 %v703, %v702
    %v933 = vpack.c.b16 %v705, %v704
    %v934 = vpack.c.b16 %v707, %v706
    %v935 = vpack.c.b16 %v709, %v708
    %v936 = vpack.c.b16 %v711, %v710
    %v937 = vpack.c.b16 %v713, %v712
    %v938 = vpack.c.b16 %v715, %v714
    %v939 = vpack.c.b16 %v717, %v716
    %v940 = vpack.c.b16 %v719, %v718
    %v941 = vpack.c.b16 %v721, %v720
    %v942 = vpack.c.b16 %v723, %v722
    %v943 = vpack.c.b16 %v725, %v724
    %v944 = vpack.c.b16 %v727, %v726
    %v945 = vpack.c.b16 %v729, %v728
    %v946 = vpack.c.b16 %v731, %v730
    %v947 = vpack.c.b16 %v733, %v732
    %v948 = vpack.c.b16 %v735, %v734
    %v949 = vpack.c.b16 %v737, %v736
    %v950 = vpack.c.b16 %v739, %v738
    %v951 = vpack.c.b16 %v741, %v740
    %v952 = vpack.c.b16 %v743, %v742
    %v953 = vpack.c.b16 %v745, %v744
    %v954 = vpack.c.b16 %v747, %v746
    %v955 = vpack.c.b16 %v749, %v748
    %v956 = vpack.c.b16 %v751, %v750
    %v957 = vpack.c.b16 %v753, %v752
    %v958 = vpack.c.b16 %v755, %v754
    %v959 = vpack.c.b16 %v757, %v756
    %v960 = vpack.c.b16 %v759, %v758
    %v961 = vpack.c.b16 %v761, %v760
    %v962 = vpack.c.b16 %v763, %v762
    %v963 = vpack.c.b16 %v765, %v764
    %v964 = vpack.c.b16 %v767, %v766
    %v965 = vpack.c.b16 %v769, %v768
    %v966 = vpack.c.b16 %v771, %v770
    %v967 = vpack.c.b16 %v773, %v772
    %v968 = vpack.c.b16 %v775, %v774
    %v969 = vpack.c.b16 %v777, %v776
    %v970 = vpack.c.b16 %v779, %v778
    %v971 = vpack.c.b16 %v781, %v780
    %v972 = vpack.c.b16 %v783, %v782
    %v973 = vpack.c.b16 %v785, %v784
    %v974 = vpack.c.b16 %v787, %v786
    %v975 = vpack.c.b16 %v789, %v788
    %v976 = vpack.c.b16 %v791, %v790
    %v977 = vpack.c.b16 %v793, %v792
    %v978 = vpack.c.b16 %v795, %v794
    %v979 = vpack.c.b16 %v797, %v796
    %v980 = vpack.c.b16 %v799, %v798
    %v981 = vpack.c.b16 %v801, %v800
    %v982 = vpack.c.b16 %v803, %v802
    %v983 = vpack.c.b16 %v805, %v804
    %v984 = vpack.c.b16 %v807, %v806
    %v985 = vpack.c.b16 %v809, %v808
    %v986 = vpack.c.b16 %v811, %v810
    %v987 = vpack.c.b16 %v813, %v812
    %v988 = vpack.c.b16 %v815, %v814
    %v989 = vpack.c.b16 %v817, %v816
    %v990 = vpack.c.b16 %v819, %v818
    %v991 = vpack.c.b16 %v821, %v820
    %v992 = vpack.c.b16 %v823, %v822
    %v993 = vpack.c.b16 %v825, %v824
    %v994 = vpack.c.b16 %v827, %v826
    %v995 = vpack.c.b16 %v829, %v828
    %v996 = vpack.c.b16 %v831, %v830
    %v997 = vpack.c.b16 %v833, %v832
    %v998 = vpack.c.b16 %v835, %v834
    %v999 = vpack.c.b16 %v837, %v836
    %v1000 = vpack.c.b16 %v839, %v838
    %v1001 = vpack.c.b16 %v841, %v840
    %v1002 = vpack.c.b16 %v843, %v842
    %v1003 = vpack.c.b16 %v845, %v844
    %v1004 = vpack.c.b16 %v847, %v846
    %v1005 = vpack.c.b16 %v849, %v848
    %v1006 = vpack.c.b16 %v851, %v850
    %v1007 = vpack.c.b16 %v853, %v852
    %v1008 = vpack.c.b16 %v855, %v854
    %v1009 = vpack.c.b16 %v857, %v856
    %v1010 = vpack.c.b16 %v859, %v858
    %v1011 = vpack.c.b16 %v861, %v860
    %v1012 = vpack.c.b16 %v863, %v862
    %v1013 = vpack.c.b16 %v865, %v864
    %v1014 = vpack.c.b16 %v867, %v866
    %v1015 = vpack.c.b16 %v869, %v868
    %v1016 = vpack.c.b16 %v871, %v870
    %v1017 = vpack.c.b16 %v873, %v872
    %v1018 = vpack.c.b16 %v875, %v874
    %v1019 = vpack.c.b16 %v877, %v876
    %v1020 = vpack.c.b16 %v879, %v878
    %v1021 = vpack.c.b16 %v881, %v880
    %v1022 = vpack.c.b16 %v883, %v882
    %v1023 = vpack.c.b16 %v885, %v884
    %v1024 = vpack.c.b16 %v887, %v886
    %v1025 = vpack.c.b16 %v889, %v888
    %v1026 = vpack.c.b16 %v891, %v890
    %v1027 = vpack.c.b16 %v893, %v892
    %v1028 = vpack.c.b16 %v895, %v894
    %v1029 = vpack.c.b16 %v897, %v896
    %v1030 = vpack.c.b16 %v899, %v898
    %v1031 = vpack.c.b16 %v901, %v900
    %v1032 = vpack.c.b16 %v903, %v902
    %v1033 = vpack.c.b16 %v905, %v904
    %1162 = vmatprep.subr.bf16.mxu0 0
    %1163 = vmatpush1.bf16.msra.mxu0 %v906
    %1164 = vmatprep.subr.bf16.mxu0 0
    %1165 = vmatpush1.bf16.msra.mxu0 %v907
    %1166 = vmatprep.subr.bf16.mxu0 0
    %1167 = vmatpush1.bf16.msra.mxu0 %v908
    %1168 = vmatprep.subr.bf16.mxu0 0
    %1169 = vmatpush1.bf16.msra.mxu0 %v909
    %1170 = vmatprep.subr.bf16.mxu0 0
    %1171 = vmatpush1.bf16.msra.mxu0 %v910
    %1172 = vmatprep.subr.bf16.mxu0 0
    %1173 = vmatpush1.bf16.msra.mxu0 %v911
    %1174 = vmatprep.subr.bf16.mxu0 0
    %1175 = vmatpush1.bf16.msra.mxu0 %v912
    %1176 = vmatprep.subr.bf16.mxu0 0
    %1177 = vmatpush1.bf16.msra.mxu0 %v913
    %1178 = vmatprep.subr.bf16.mxu0 0
    %1179 = vmatpush1.bf16.msra.mxu0 %v914
    %1180 = vmatprep.subr.bf16.mxu0 0
    %1181 = vmatpush1.bf16.msra.mxu0 %v915
    %1182 = vmatprep.subr.bf16.mxu0 0
    %1183 = vmatpush1.bf16.msra.mxu0 %v916
    %1184 = vmatprep.subr.bf16.mxu0 0
    %1185 = vmatpush1.bf16.msra.mxu0 %v917
    %1186 = vmatprep.subr.bf16.mxu0 0
    %1187 = vmatpush1.bf16.msra.mxu0 %v918
    %1188 = vmatprep.subr.bf16.mxu0 0
    %1189 = vmatpush1.bf16.msra.mxu0 %v919
    %1190 = vmatprep.subr.bf16.mxu0 0
    %1191 = vmatpush1.bf16.msra.mxu0 %v920
    %1192 = vmatprep.subr.bf16.mxu0 0
    %1193 = vmatpush1.bf16.msra.mxu0 %v921
    %1194 = vmatprep.mubr.bf16.mxu0 %v116
    %1195 = vmatmul.mubr.bf16.gmra.mrb[0].mxu0 %v115
    %v1196 = vpop.f32.mrb[0].mxu0
    %v1197 = vadd.f32 %v392, %v1196
    %v1198 = vpop.f32.mrb[0].mxu0
    %v1199 = vpop.f32.mrb[0].mxu0
    %v1200 = vadd.f32 %v392, %v1199
    %v1201 = vpop.f32.mrb[0].mxu0
    %1202 = vdwg.mxu0
    %1203 = vmatprep.subr.bf16.mxu0 0
    %1204 = vmatpush1.bf16.msra.mxu0 %v922
    %1205 = vmatprep.subr.bf16.mxu0 0
    %1206 = vmatpush1.bf16.msra.mxu0 %v923
    %1207 = vmatprep.subr.bf16.mxu0 0
    %1208 = vmatpush1.bf16.msra.mxu0 %v924
    %1209 = vmatprep.subr.bf16.mxu0 0
    %1210 = vmatpush1.bf16.msra.mxu0 %v925
    %1211 = vmatprep.subr.bf16.mxu0 0
    %1212 = vmatpush1.bf16.msra.mxu0 %v926
    %1213 = vmatprep.subr.bf16.mxu0 0
    %1214 = vmatpush1.bf16.msra.mxu0 %v927
    %1215 = vmatprep.subr.bf16.mxu0 0
    %1216 = vmatpush1.bf16.msra.mxu0 %v928
    %1217 = vmatprep.subr.bf16.mxu0 0
    %1218 = vmatpush1.bf16.msra.mxu0 %v929
    %1219 = vmatprep.subr.bf16.mxu0 0
    %1220 = vmatpush1.bf16.msra.mxu0 %v930
    %1221 = vmatprep.subr.bf16.mxu0 0
    %1222 = vmatpush1.bf16.msra.mxu0 %v931
    %1223 = vmatprep.subr.bf16.mxu0 0
    %1224 = vmatpush1.bf16.msra.mxu0 %v932
    %1225 = vmatprep.subr.bf16.mxu0 0
    %1226 = vmatpush1.bf16.msra.mxu0 %v933
    %1227 = vmatprep.subr.bf16.mxu0 0
    %1228 = vmatpush1.bf16.msra.mxu0 %v934
    %1229 = vmatprep.subr.bf16.mxu0 0
    %1230 = vmatpush1.bf16.msra.mxu0 %v935
    %1231 = vmatprep.subr.bf16.mxu0 0
    %1232 = vmatpush1.bf16.msra.mxu0 %v936
    %1233 = vmatprep.subr.bf16.mxu0 0
    %1234 = vmatpush1.bf16.msra.mxu0 %v937
    %1235 = vmatprep.mubr.bf16.mxu0 %v118
    %1236 = vmatmul.mubr.bf16.gmra.mrb[0].mxu0 %v117
    %v1237 = vpop.f32.mrb[0].mxu0
    %v1238 = vadd.f32 %v1197, %v1237
    %v1239 = vpop.f32.mrb[0].mxu0
    %v1240 = vpop.f32.mrb[0].mxu0
    %v1241 = vadd.f32 %v1200, %v1240
    %v1242 = vpop.f32.mrb[0].mxu0
    %1243 = vdwg.mxu0
    %1244 = vmatprep.subr.bf16.mxu0 0
    %1245 = vmatpush1.bf16.msra.mxu0 %v938
    %1246 = vmatprep.subr.bf16.mxu0 0
    %1247 = vmatpush1.bf16.msra.mxu0 %v939
    %1248 = vmatprep.subr.bf16.mxu0 0
    %1249 = vmatpush1.bf16.msra.mxu0 %v940
    %1250 = vmatprep.subr.bf16.mxu0 0
    %1251 = vmatpush1.bf16.msra.mxu0 %v941
    %1252 = vmatprep.subr.bf16.mxu0 0
    %1253 = vmatpush1.bf16.msra.mxu0 %v942
    %1254 = vmatprep.subr.bf16.mxu0 0
    %1255 = vmatpush1.bf16.msra.mxu0 %v943
    %1256 = vmatprep.subr.bf16.mxu0 0
    %1257 = vmatpush1.bf16.msra.mxu0 %v944
    %1258 = vmatprep.subr.bf16.mxu0 0
    %1259 = vmatpush1.bf16.msra.mxu0 %v945
    %1260 = vmatprep.subr.bf16.mxu0 0
    %1261 = vmatpush1.bf16.msra.mxu0 %v946
    %1262 = vmatprep.subr.bf16.mxu0 0
    %1263 = vmatpush1.bf16.msra.mxu0 %v947
    %1264 = vmatprep.subr.bf16.mxu0 0
    %1265 = vmatpush1.bf16.msra.mxu0 %v948
    %1266 = vmatprep.subr.bf16.mxu0 0
    %1267 = vmatpush1.bf16.msra.mxu0 %v949
    %1268 = vmatprep.subr.bf16.mxu0 0
    %1269 = vmatpush1.bf16.msra.mxu0 %v950
    %1270 = vmatprep.subr.bf16.mxu0 0
    %1271 = vmatpush1.bf16.msra.mxu0 %v951
    %1272 = vmatprep.subr.bf16.mxu0 0
    %1273 = vmatpush1.bf16.msra.mxu0 %v952
    %1274 = vmatprep.subr.bf16.mxu0 0
    %1275 = vmatpush1.bf16.msra.mxu0 %v953
    %1276 = vmatprep.mubr.bf16.mxu0 %v120
    %1277 = vmatmul.mubr.bf16.gmra.mrb[0].mxu0 %v119
    %v1278 = vpop.f32.mrb[0].mxu0
    %v1279 = vadd.f32 %v1238, %v1278
    %v1280 = vpop.f32.mrb[0].mxu0
    %v1281 = vpop.f32.mrb[0].mxu0
    %v1282 = vadd.f32 %v1241, %v1281
    %v1283 = vpop.f32.mrb[0].mxu0
    %1284 = vdwg.mxu0
    %1285 = vmatprep.subr.bf16.mxu0 0
    %1286 = vmatpush1.bf16.msra.mxu0 %v954
    %1287 = vmatprep.subr.bf16.mxu0 0
    %1288 = vmatpush1.bf16.msra.mxu0 %v955
    %1289 = vmatprep.subr.bf16.mxu0 0
    %1290 = vmatpush1.bf16.msra.mxu0 %v956
    %1291 = vmatprep.subr.bf16.mxu0 0
    %1292 = vmatpush1.bf16.msra.mxu0 %v957
    %1293 = vmatprep.subr.bf16.mxu0 0
    %1294 = vmatpush1.bf16.msra.mxu0 %v958
    %1295 = vmatprep.subr.bf16.mxu0 0
    %1296 = vmatpush1.bf16.msra.mxu0 %v959
    %1297 = vmatprep.subr.bf16.mxu0 0
    %1298 = vmatpush1.bf16.msra.mxu0 %v960
    %1299 = vmatprep.subr.bf16.mxu0 0
    %1300 = vmatpush1.bf16.msra.mxu0 %v961
    %1301 = vmatprep.subr.bf16.mxu0 0
    %1302 = vmatpush1.bf16.msra.mxu0 %v962
    %1303 = vmatprep.subr.bf16.mxu0 0
    %1304 = vmatpush1.bf16.msra.mxu0 %v963
    %1305 = vmatprep.subr.bf16.mxu0 0
    %1306 = vmatpush1.bf16.msra.mxu0 %v964
    %1307 = vmatprep.subr.bf16.mxu0 0
    %1308 = vmatpush1.bf16.msra.mxu0 %v965
    %1309 = vmatprep.subr.bf16.mxu0 0
    %1310 = vmatpush1.bf16.msra.mxu0 %v966
    %1311 = vmatprep.subr.bf16.mxu0 0
    %1312 = vmatpush1.bf16.msra.mxu0 %v967
    %1313 = vmatprep.subr.bf16.mxu0 0
    %1314 = vmatpush1.bf16.msra.mxu0 %v968
    %1315 = vmatprep.subr.bf16.mxu0 0
    %1316 = vmatpush1.bf16.msra.mxu0 %v969
    %1317 = vmatprep.mubr.bf16.mxu0 %v122
    %1318 = vmatmul.mubr.bf16.gmra.mrb[0].mxu0 %v121
    %v1319 = vpop.f32.mrb[0].mxu0
    %v1320 = vadd.f32 %v1279, %v1319
    %v1321 = vpop.f32.mrb[0].mxu0
    %v1322 = vpop.f32.mrb[0].mxu0
    %v1323 = vadd.f32 %v1282, %v1322
    %v1324 = vpop.f32.mrb[0].mxu0
    %1325 = vdwg.mxu0
    %1326 = vmatprep.subr.bf16.mxu0 0
    %1327 = vmatpush1.bf16.msra.mxu0 %v970
    %1328 = vmatprep.subr.bf16.mxu0 0
    %1329 = vmatpush1.bf16.msra.mxu0 %v971
    %1330 = vmatprep.subr.bf16.mxu0 0
    %1331 = vmatpush1.bf16.msra.mxu0 %v972
    %1332 = vmatprep.subr.bf16.mxu0 0
    %1333 = vmatpush1.bf16.msra.mxu0 %v973
    %1334 = vmatprep.subr.bf16.mxu0 0
    %1335 = vmatpush1.bf16.msra.mxu0 %v974
    %1336 = vmatprep.subr.bf16.mxu0 0
    %1337 = vmatpush1.bf16.msra.mxu0 %v975
    %1338 = vmatprep.subr.bf16.mxu0 0
    %1339 = vmatpush1.bf16.msra.mxu0 %v976
    %1340 = vmatprep.subr.bf16.mxu0 0
    %1341 = vmatpush1.bf16.msra.mxu0 %v977
    %1342 = vmatprep.subr.bf16.mxu0 0
    %1343 = vmatpush1.bf16.msra.mxu0 %v978
    %1344 = vmatprep.subr.bf16.mxu0 0
    %1345 = vmatpush1.bf16.msra.mxu0 %v979
    %1346 = vmatprep.subr.bf16.mxu0 0
    %1347 = vmatpush1.bf16.msra.mxu0 %v980
    %1348 = vmatprep.subr.bf16.mxu0 0
    %1349 = vmatpush1.bf16.msra.mxu0 %v981
    %1350 = vmatprep.subr.bf16.mxu0 0
    %1351 = vmatpush1.bf16.msra.mxu0 %v982
    %1352 = vmatprep.subr.bf16.mxu0 0
    %1353 = vmatpush1.bf16.msra.mxu0 %v983
    %1354 = vmatprep.subr.bf16.mxu0 0
    %1355 = vmatpush1.bf16.msra.mxu0 %v984
    %1356 = vmatprep.subr.bf16.mxu0 0
    %1357 = vmatpush1.bf16.msra.mxu0 %v985
    %1358 = vmatprep.mubr.bf16.mxu0 %v124
    %1359 = vmatmul.mubr.bf16.gmra.mrb[0].mxu0 %v123
    %v1360 = vpop.f32.mrb[0].mxu0
    %v1361 = vadd.f32 %v1320, %v1360
    %v1362 = vpop.f32.mrb[0].mxu0
    %v1363 = vpop.f32.mrb[0].mxu0
    %v1364 = vadd.f32 %v1323, %v1363
    %v1365 = vpop.f32.mrb[0].mxu0
    %1366 = vdwg.mxu0
    %1367 = vmatprep.subr.bf16.mxu0 0
    %1368 = vmatpush1.bf16.msra.mxu0 %v986
    %1369 = vmatprep.subr.bf16.mxu0 0
    %1370 = vmatpush1.bf16.msra.mxu0 %v987
    %1371 = vmatprep.subr.bf16.mxu0 0
    %1372 = vmatpush1.bf16.msra.mxu0 %v988
    %1373 = vmatprep.subr.bf16.mxu0 0
    %1374 = vmatpush1.bf16.msra.mxu0 %v989
    %1375 = vmatprep.subr.bf16.mxu0 0
    %1376 = vmatpush1.bf16.msra.mxu0 %v990
    %1377 = vmatprep.subr.bf16.mxu0 0
    %1378 = vmatpush1.bf16.msra.mxu0 %v991
    %1379 = vmatprep.subr.bf16.mxu0 0
    %1380 = vmatpush1.bf16.msra.mxu0 %v992
    %1381 = vmatprep.subr.bf16.mxu0 0
    %1382 = vmatpush1.bf16.msra.mxu0 %v993
    %1383 = vmatprep.subr.bf16.mxu0 0
    %1384 = vmatpush1.bf16.msra.mxu0 %v994
    %1385 = vmatprep.subr.bf16.mxu0 0
    %1386 = vmatpush1.bf16.msra.mxu0 %v995
    %1387 = vmatprep.subr.bf16.mxu0 0
    %1388 = vmatpush1.bf16.msra.mxu0 %v996
    %1389 = vmatprep.subr.bf16.mxu0 0
    %1390 = vmatpush1.bf16.msra.mxu0 %v997
    %1391 = vmatprep.subr.bf16.mxu0 0
    %1392 = vmatpush1.bf16.msra.mxu0 %v998
    %1393 = vmatprep.subr.bf16.mxu0 0
    %1394 = vmatpush1.bf16.msra.mxu0 %v999
    %1395 = vmatprep.subr.bf16.mxu0 0
    %1396 = vmatpush1.bf16.msra.mxu0 %v1000
    %1397 = vmatprep.subr.bf16.mxu0 0
    %1398 = vmatpush1.bf16.msra.mxu0 %v1001
    %1399 = vmatprep.mubr.bf16.mxu0 %v126
    %1400 = vmatmul.mubr.bf16.gmra.mrb[0].mxu0 %v125
    %v1401 = vpop.f32.mrb[0].mxu0
    %v1402 = vadd.f32 %v1361, %v1401
    %v1403 = vpop.f32.mrb[0].mxu0
    %v1404 = vpop.f32.mrb[0].mxu0
    %v1405 = vadd.f32 %v1364, %v1404
    %v1406 = vpop.f32.mrb[0].mxu0
    %1407 = vdwg.mxu0
    %1408 = vmatprep.subr.bf16.mxu0 0
    %1409 = vmatpush1.bf16.msra.mxu0 %v1002
    %1410 = vmatprep.subr.bf16.mxu0 0
    %1411 = vmatpush1.bf16.msra.mxu0 %v1003
    %1412 = vmatprep.subr.bf16.mxu0 0
    %1413 = vmatpush1.bf16.msra.mxu0 %v1004
    %1414 = vmatprep.subr.bf16.mxu0 0
    %1415 = vmatpush1.bf16.msra.mxu0 %v1005
    %1416 = vmatprep.subr.bf16.mxu0 0
    %1417 = vmatpush1.bf16.msra.mxu0 %v1006
    %1418 = vmatprep.subr.bf16.mxu0 0
    %1419 = vmatpush1.bf16.msra.mxu0 %v1007
    %1420 = vmatprep.subr.bf16.mxu0 0
    %1421 = vmatpush1.bf16.msra.mxu0 %v1008
    %1422 = vmatprep.subr.bf16.mxu0 0
    %1423 = vmatpush1.bf16.msra.mxu0 %v1009
    %1424 = vmatprep.subr.bf16.mxu0 0
    %1425 = vmatpush1.bf16.msra.mxu0 %v1010
    %1426 = vmatprep.subr.bf16.mxu0 0
    %1427 = vmatpush1.bf16.msra.mxu0 %v1011
    %1428 = vmatprep.subr.bf16.mxu0 0
    %1429 = vmatpush1.bf16.msra.mxu0 %v1012
    %1430 = vmatprep.subr.bf16.mxu0 0
    %1431 = vmatpush1.bf16.msra.mxu0 %v1013
    %1432 = vmatprep.subr.bf16.mxu0 0
    %1433 = vmatpush1.bf16.msra.mxu0 %v1014
    %1434 = vmatprep.subr.bf16.mxu0 0
    %1435 = vmatpush1.bf16.msra.mxu0 %v1015
    %1436 = vmatprep.subr.bf16.mxu0 0
    %1437 = vmatpush1.bf16.msra.mxu0 %v1016
    %1438 = vmatprep.subr.bf16.mxu0 0
    %1439 = vmatpush1.bf16.msra.mxu0 %v1017
    %1440 = vmatprep.mubr.bf16.mxu0 %v128
    %1441 = vmatmul.mubr.bf16.gmra.mrb[0].mxu0 %v127
    %v1442 = vpop.f32.mrb[0].mxu0
    %v1443 = vadd.f32 %v1402, %v1442
    %v1444 = vpop.f32.mrb[0].mxu0
    %v1445 = vpop.f32.mrb[0].mxu0
    %v1446 = vadd.f32 %v1405, %v1445
    %v1447 = vpop.f32.mrb[0].mxu0
    %1448 = vdwg.mxu0
    %1449 = vmatprep.subr.bf16.mxu0 0
    %1450 = vmatpush1.bf16.msra.mxu0 %v1018
    %1451 = vmatprep.subr.bf16.mxu0 0
    %1452 = vmatpush1.bf16.msra.mxu0 %v1019
    %1453 = vmatprep.subr.bf16.mxu0 0
    %1454 = vmatpush1.bf16.msra.mxu0 %v1020
    %1455 = vmatprep.subr.bf16.mxu0 0
    %1456 = vmatpush1.bf16.msra.mxu0 %v1021
    %1457 = vmatprep.subr.bf16.mxu0 0
    %1458 = vmatpush1.bf16.msra.mxu0 %v1022
    %1459 = vmatprep.subr.bf16.mxu0 0
    %1460 = vmatpush1.bf16.msra.mxu0 %v1023
    %1461 = vmatprep.subr.bf16.mxu0 0
    %1462 = vmatpush1.bf16.msra.mxu0 %v1024
    %1463 = vmatprep.subr.bf16.mxu0 0
    %1464 = vmatpush1.bf16.msra.mxu0 %v1025
    %1465 = vmatprep.subr.bf16.mxu0 0
    %1466 = vmatpush1.bf16.msra.mxu0 %v1026
    %1467 = vmatprep.subr.bf16.mxu0 0
    %1468 = vmatpush1.bf16.msra.mxu0 %v1027
    %1469 = vmatprep.subr.bf16.mxu0 0
    %1470 = vmatpush1.bf16.msra.mxu0 %v1028
    %1471 = vmatprep.subr.bf16.mxu0 0
    %1472 = vmatpush1.bf16.msra.mxu0 %v1029
    %1473 = vmatprep.subr.bf16.mxu0 0
    %1474 = vmatpush1.bf16.msra.mxu0 %v1030
    %1475 = vmatprep.subr.bf16.mxu0 0
    %1476 = vmatpush1.bf16.msra.mxu0 %v1031
    %1477 = vmatprep.subr.bf16.mxu0 0
    %1478 = vmatpush1.bf16.msra.mxu0 %v1032
    %1479 = vmatprep.subr.bf16.mxu0 0
    %1480 = vmatpush1.bf16.msra.mxu0 %v1033
    %1481 = vmatprep.mubr.bf16.mxu0 %v130
    %1482 = vmatmul.mubr.bf16.gmra.mrb[0].mxu0 %v129
    %v1483 = vpop.f32.mrb[0].mxu0
    %v1484 = vadd.f32 %v1443, %v1483
    %v1485 = vpop.f32.mrb[0].mxu0
    %v1486 = vpop.f32.mrb[0].mxu0
    %v1487 = vadd.f32 %v1446, %v1486
    %v1488 = vpop.f32.mrb[0].mxu0
    %1489 = vdwg.mxu0
    %v1490 = vmax.f32 %v1484, 0.0
    %v1491 = vmax.f32 %v1487, 0.0
    %v1492 = vpack.c.bf16 %v1491, %v1490
    %v1493 = vld [vmem:[#allocation7] sm:$0xf]
    %v1494 = vld [vmem:[#allocation7 + $0x4] sm:$0xf]
    %v1495 = vld [vmem:[#allocation7 + $0x8] sm:$0xf]
    %v1496 = vld [vmem:[#allocation7 + $0xc] sm:$0xf]
    %v1497 = vld [vmem:[#allocation7 + $0x10] sm:$0xf]
    %v1498 = vld [vmem:[#allocation7 + $0x14] sm:$0xf]
    %v1499 = vld [vmem:[#allocation7 + $0x18] sm:$0xf]
    %v1500 = vld [vmem:[#allocation7 + $0x1c] sm:$0xf]
    %v1501 = vld [vmem:[#allocation7 + $0x20] sm:$0xf]
    %v1502 = vld [vmem:[#allocation7 + $0x24] sm:$0xf]
    %v1503 = vld [vmem:[#allocation7 + $0x28] sm:$0xf]
    %v1504 = vld [vmem:[#allocation7 + $0x2c] sm:$0xf]
    %v1505 = vld [vmem:[#allocation7 + $0x30] sm:$0xf]
    %v1506 = vld [vmem:[#allocation7 + $0x34] sm:$0xf]
    %v1507 = vld [vmem:[#allocation7 + $0x38] sm:$0xf]
    %v1508 = vld [vmem:[#allocation7 + $0x3c] sm:$0xf]
    %v1509 = vld [vmem:[%s4] sm:$0x1]
    %v1511 = vlaneseq
    %v1512 = vshrl.u32 %v1511, 7
    %v1513 = vsub.s32 0, %v1512
    %v1514 = vrot.slane %v1509, %v1513
    %v1532 = vunpack.c.l.b16 %v1493
    %v1533 = vunpack.c.l.b16 %v1494
    %v1534 = vunpack.c.l.b16 %v1495
    %v1535 = vunpack.c.l.b16 %v1496
    %v1536 = vunpack.c.l.b16 %v1497
    %v1537 = vunpack.c.l.b16 %v1498
    %v1538 = vunpack.c.l.b16 %v1499
    %v1539 = vunpack.c.l.b16 %v1500
    %v1540 = vunpack.c.l.b16 %v1501
    %v1541 = vunpack.c.l.b16 %v1502
    %v1542 = vunpack.c.l.b16 %v1503
    %v1543 = vunpack.c.l.b16 %v1504
    %v1544 = vunpack.c.l.b16 %v1505
    %v1545 = vunpack.c.l.b16 %v1506
    %v1546 = vunpack.c.l.b16 %v1507
    %v1547 = vunpack.c.l.b16 %v1508
    %v1548 = vpack.c.b16 %v1533, %v1532
    %v1549 = vpack.c.b16 %v1535, %v1534
    %v1550 = vpack.c.b16 %v1537, %v1536
    %v1551 = vpack.c.b16 %v1539, %v1538
    %v1552 = vpack.c.b16 %v1541, %v1540
    %v1553 = vpack.c.b16 %v1543, %v1542
    %v1554 = vpack.c.b16 %v1545, %v1544
    %v1555 = vpack.c.b16 %v1547, %v1546
    %1564 = vmatprep.subr.bf16.mxu0 0
    %1565 = vmatpush1.bf16.msra.mxu0 %v1548
    %1566 = vmatprep.subr.bf16.mxu0 0
    %1567 = vmatpush1.bf16.msra.mxu0 %v1549
    %1568 = vmatprep.subr.bf16.mxu0 0
    %1569 = vmatpush1.bf16.msra.mxu0 %v1550
    %1570 = vmatprep.subr.bf16.mxu0 0
    %1571 = vmatpush1.bf16.msra.mxu0 %v1551
    %1572 = vmatprep.subr.bf16.mxu0 0
    %1573 = vmatpush1.bf16.msra.mxu0 %v1552
    %1574 = vmatprep.subr.bf16.mxu0 0
    %1575 = vmatpush1.bf16.msra.mxu0 %v1553
    %1576 = vmatprep.subr.bf16.mxu0 0
    %1577 = vmatpush1.bf16.msra.mxu0 %v1554
    %1578 = vmatprep.subr.bf16.mxu0 0
    %1579 = vmatpush1.bf16.msra.mxu0 %v1555
    %1580 = vmatprep.subr.bf16.mxu0 0
    %1581 = vmatpush1.bf16.msra.mxu0 0
    %1582 = vmatprep.subr.bf16.mxu0 0
    %1583 = vmatpush1.bf16.msra.mxu0 0
    %1584 = vmatprep.subr.bf16.mxu0 0
    %1585 = vmatpush1.bf16.msra.mxu0 0
    %1586 = vmatprep.subr.bf16.mxu0 0
    %1587 = vmatpush1.bf16.msra.mxu0 0
    %1588 = vmatprep.subr.bf16.mxu0 0
    %1589 = vmatpush1.bf16.msra.mxu0 0
    %1590 = vmatprep.subr.bf16.mxu0 0
    %1591 = vmatpush1.bf16.msra.mxu0 0
    %1592 = vmatprep.subr.bf16.mxu0 0
    %1593 = vmatpush1.bf16.msra.mxu0 0
    %1594 = vmatprep.subr.bf16.mxu0 0
    %1595 = vmatpush1.bf16.msra.mxu0 0
    %1596 = vmatprep.mubr.bf16.mxu0 0
    %1597 = vmatmul.mubr.bf16.gmra.mrb[0].mxu0 %v1492
    %v1598 = vpop.f32.mrb[0].mxu0
    %v1599 = vadd.f32 %v1514, %v1598
    %v1600 = vpop.f32.mrb[0].mxu0
    %v1601 = vpop.f32.mrb[0].mxu0
    %v1602 = vadd.f32 %v1514, %v1601
    %v1603 = vpop.f32.mrb[0].mxu0
    %1604 = vdwg.mxu0
    %v1605 = vmax.f32 %v1599, 0.0
    %v1606 = vmax.f32 %v1602, 0.0
    %v1607 = vpack.c.bf16 %v1606, %v1605
    %v1608 = vld [vmem:[#allocation8] sm:$0xf]
    %v1609 = vld [vmem:[#allocation8 + $0x4] sm:$0xf]
    %v1610 = vld [vmem:[#allocation8 + $0x8] sm:$0xf]
    %v1611 = vld [vmem:[#allocation8 + $0xc] sm:$0xf]
    %v1612 = vld [vmem:[#allocation8 + $0x10] sm:$0xf]
    %v1613 = vld [vmem:[#allocation8 + $0x14] sm:$0xf]
    %v1614 = vld [vmem:[#allocation8 + $0x18] sm:$0xf]
    %v1615 = vld [vmem:[#allocation8 + $0x1c] sm:$0xf]
    %v1616 = vld [vmem:[#allocation8 + $0x20] sm:$0xf]
    %v1617 = vld [vmem:[#allocation8 + $0x24] sm:$0xf]
    %v1618 = vld [vmem:[#allocation8 + $0x28] sm:$0xf]
    %v1619 = vld [vmem:[#allocation8 + $0x2c] sm:$0xf]
    %v1620 = vld [vmem:[#allocation8 + $0x30] sm:$0xf]
    %v1621 = vld [vmem:[#allocation8 + $0x34] sm:$0xf]
    %v1622 = vld [vmem:[#allocation8 + $0x38] sm:$0xf]
    %v1623 = vld [vmem:[#allocation8 + $0x3c] sm:$0xf]
    %v1624 = vld [vmem:[%s6] sm:$0x1]
    %v1626 = vlaneseq
    %v1627 = vshrl.u32 %v1626, 7
    %v1628 = vsub.s32 0, %v1627
    %v1629 = vrot.slane %v1624, %v1628
    %v1647 = vunpack.c.l.b16 %v1608
    %v1648 = vunpack.c.l.b16 %v1609
    %v1649 = vunpack.c.l.b16 %v1610
    %v1650 = vunpack.c.l.b16 %v1611
    %v1651 = vunpack.c.l.b16 %v1612
    %v1652 = vunpack.c.l.b16 %v1613
    %v1653 = vunpack.c.l.b16 %v1614
    %v1654 = vunpack.c.l.b16 %v1615
    %v1655 = vunpack.c.l.b16 %v1616
    %v1656 = vunpack.c.l.b16 %v1617
    %v1657 = vunpack.c.l.b16 %v1618
    %v1658 = vunpack.c.l.b16 %v1619
    %v1659 = vunpack.c.l.b16 %v1620
    %v1660 = vunpack.c.l.b16 %v1621
    %v1661 = vunpack.c.l.b16 %v1622
    %v1662 = vunpack.c.l.b16 %v1623
    %v1663 = vpack.c.b16 %v1648, %v1647
    %v1664 = vpack.c.b16 %v1650, %v1649
    %v1665 = vpack.c.b16 %v1652, %v1651
    %v1666 = vpack.c.b16 %v1654, %v1653
    %v1667 = vpack.c.b16 %v1656, %v1655
    %v1668 = vpack.c.b16 %v1658, %v1657
    %v1669 = vpack.c.b16 %v1660, %v1659
    %v1670 = vpack.c.b16 %v1662, %v1661
    %1679 = vmatprep.subr.bf16.mxu0 0
    %1680 = vmatpush1.bf16.msra.mxu0 %v1663
    %1681 = vmatprep.subr.bf16.mxu0 0
    %1682 = vmatpush1.bf16.msra.mxu0 %v1664
    %1683 = vmatprep.subr.bf16.mxu0 0
    %1684 = vmatpush1.bf16.msra.mxu0 %v1665
    %1685 = vmatprep.subr.bf16.mxu0 0
    %1686 = vmatpush1.bf16.msra.mxu0 %v1666
    %1687 = vmatprep.subr.bf16.mxu0 0
    %1688 = vmatpush1.bf16.msra.mxu0 %v1667
    %1689 = vmatprep.subr.bf16.mxu0 0
    %1690 = vmatpush1.bf16.msra.mxu0 %v1668
    %1691 = vmatprep.subr.bf16.mxu0 0
    %1692 = vmatpush1.bf16.msra.mxu0 %v1669
    %1693 = vmatprep.subr.bf16.mxu0 0
    %1694 = vmatpush1.bf16.msra.mxu0 %v1670
    %1695 = vmatprep.subr.bf16.mxu0 0
    %1696 = vmatpush1.bf16.msra.mxu0 0
    %1697 = vmatprep.subr.bf16.mxu0 0
    %1698 = vmatpush1.bf16.msra.mxu0 0
    %1699 = vmatprep.subr.bf16.mxu0 0
    %1700 = vmatpush1.bf16.msra.mxu0 0
    %1701 = vmatprep.subr.bf16.mxu0 0
    %1702 = vmatpush1.bf16.msra.mxu0 0
    %1703 = vmatprep.subr.bf16.mxu0 0
    %1704 = vmatpush1.bf16.msra.mxu0 0
    %1705 = vmatprep.subr.bf16.mxu0 0
    %1706 = vmatpush1.bf16.msra.mxu0 0
    %1707 = vmatprep.subr.bf16.mxu0 0
    %1708 = vmatpush1.bf16.msra.mxu0 0
    %1709 = vmatprep.subr.bf16.mxu0 0
    %1710 = vmatpush1.bf16.msra.mxu0 0
    %1711 = vmatprep.mubr.bf16.mxu0 0
    %1712 = vmatmul.mubr.bf16.gmra.mrb[0].mxu0 %v1607
    %v1713 = vpop.f32.mrb[0].mxu0
    %v1714 = vadd.f32 %v1629, %v1713
    %v1715 = vpop.f32.mrb[0].mxu0
    %v1716 = vpop.f32.mrb[0].mxu0
    %v1717 = vadd.f32 %v1629, %v1716
    %v1718 = vpop.f32.mrb[0].mxu0
    %1719 = vdwg.mxu0
    %1720 = vmax.xlane.f32.xlu0 %v1714
    %v1721 = vpop.xlane.xlu0 %1720
    %1722 = vmax.xlane.f32.xlu0 %v1717
    %v1723 = vpop.xlane.xlu0 %1722
    %v1724 = vsub.f32 %v1714, %v1721
    %v1725 = vsub.f32 %v1717, %v1723
    %v1726 = vmul.f32 %v1724, 1.442695
    %v1727 = vpow.pop %v1726
    %v1728 = vmul.f32 %v1725, 1.442695
    %v1729 = vpow.pop %v1728
    %1730 = vadd.xlane.f32.xlu0 %v1727
    %v1731 = vpop.xlane.xlu0 %1730
    %1732 = vadd.xlane.f32.xlu0 %v1729
    %v1733 = vpop.xlane.xlu0 %1732
    %v1734 = vlog2.pop %v1731
    %v1735 = vmul.f32 %v1734, 0.6931472
    %v1736 = vlog2.pop %v1733
    %v1737 = vmul.f32 %v1736, 0.6931472
    %v1738 = vsub.f32 %v1724, %v1735
    %v1739 = vsub.f32 %v1725, %v1737
    %1740 = vst [vmem:[#allocation10] sm:$0xff] %v1738
    %1741 = vst [vmem:[#allocation10 + $0x8] sm:$0xff] %v1739
    // Predicated region
    $region46: #{tpu_custom_call.1} parent=1 // pred_check
      _
    $region47: #{tpu_custom_call.1} parent=1 // pred_check_branch
      %1743 = sbr.rel (0) target = $region49
    $region48: #{tpu_custom_call.1} parent=1 // pred_region
      %s1745 = ssub.s32 256, 256
      %1746 = vsyncadd [#allocation4], %s1745
      %s1747 = sshll.u32 [#allocation10], 4
      %s1748 = int_to_ptr.vmem [resolvable:$true] %s1747
      %1753 = dma.vmem_to_hbm [thread:$0]  %s1748, 256, %s7, [#allocation4], 128, 128, 8
    $region49: #{tpu_custom_call.1} parent=1 // pred_fallthru
      _
    // Predicated region
    $region50: #{tpu_custom_call.1} parent=1 // pred_check
      _
    $region51: #{tpu_custom_call.1} parent=1 // pred_check_branch
      %1755 = sbr.rel (0) target = $region53
    $region52: #{tpu_custom_call.1} parent=1 // pred_region
      %1756 = dma.done [#allocation4], 256
    $region53: #{tpu_custom_call.1} parent=1 // pred_fallthru
      _
    %1757 = vsyncpa [#allocation3], 1
    %1758 = vsyncpa [#allocation6], 1
    %1759 = vsyncpa [#allocation9], 1
    %1760 = vsyncpa [#allocation4], 1

</llo_original>
